<compile_context>
chip_gen: v7x
topology: tpu7x:2x2x1
jax: 0.10.0
libtpu: 0.0.40
codegen_flags: <defaults>
</compile_context>

<pallas_src>
import functools

import jax
import jax.numpy as jnp
from jax.experimental import pallas as pl
from jax.experimental.pallas import tpu as pltpu


# ---------------------------------------------------------------------------
# Kernel: one grid step == one flattened-batch element, both streams fused.
# Layout inside the kernel: channels on sublanes, spatial (S = H*W) on lanes.
# ---------------------------------------------------------------------------

def _dual_sam_kernel(x1_ref, x2_ref,            # (1, K1, S) f32 inputs
                     wt_ref, wb_ref,            # (D, K1) bf16  embed conv (split)
                     be_ref,                    # (D, 1)  f32   embed bias
                     gw_ref, gb_ref,            # (D, 1)  f32   GroupNorm gamma/beta
                     gsel_ref, gselt_ref,       # (D, G), (G, D) f32 one-hot group select
                     wa_ref, ba_ref,            # (1, D) bf16, (1, 1) f32  att conv
                     o1_ref, o2_ref,            # (1, K1, 1) f32 outputs
                     *, eps):
    x1 = x1_ref[0]                              # (K1, S) f32
    x2 = x2_ref[0]
    xd = x2 - x1                                # diff stream

    wt = wt_ref[...]                            # (D, K1) bf16
    wb = wb_ref[...]
    b_emb = be_ref[...]                         # (D, 1) f32

    # 1x1 conv on cat([x, diff]) == W_top @ x + W_bot @ diff ; the diff branch
    # is shared between the "before" and "after" streams -> computed once.
    shared = jnp.dot(wb, xd.astype(jnp.bfloat16),
                     preferred_element_type=jnp.float32)          # (D, S)
    yb = jnp.dot(wt, x1.astype(jnp.bfloat16),
                 preferred_element_type=jnp.float32) + shared + b_emb
    ya = jnp.dot(wt, x2.astype(jnp.bfloat16),
                 preferred_element_type=jnp.float32) + shared + b_emb

    S = x1.shape[1]
    D = yb.shape[0]
    n_groups = gselt_ref.shape[0]
    cpg = D // n_groups
    inv_n = 1.0 / float(S * cpg)

    gsel = gsel_ref[...]                        # (D, G) one-hot membership
    gsel_t = gselt_ref[...]                     # (G, D)
    gamma = gw_ref[...]                         # (D, 1)
    beta = gb_ref[...]

    def groupnorm_relu(y):                      # y: (D, S) f32
        ch_sum = jnp.sum(y, axis=1, keepdims=True)                 # (D, 1)
        ch_sq = jnp.sum(y * y, axis=1, keepdims=True)              # (D, 1)
        g_mean = jnp.dot(gsel_t, ch_sum,
                         preferred_element_type=jnp.float32) * inv_n   # (G, 1)
        g_msq = jnp.dot(gsel_t, ch_sq,
                        preferred_element_type=jnp.float32) * inv_n    # (G, 1)
        g_inv = jax.lax.rsqrt(g_msq - g_mean * g_mean + eps)       # (G, 1)
        mean_c = jnp.dot(gsel, g_mean,
                         preferred_element_type=jnp.float32)       # (D, 1)
        inv_c = jnp.dot(gsel, g_inv,
                        preferred_element_type=jnp.float32)        # (D, 1)
        scale = inv_c * gamma                                      # (D, 1)
        shift = beta - mean_c * scale
        z = y * scale + shift                                      # (D, S)
        return jnp.maximum(z, 0.0)              # Dropout(0.5) == identity (eval)

    eb = groupnorm_relu(yb)                     # (D, S)
    ea = groupnorm_relu(ya)

    wa = wa_ref[...]                            # (1, D) bf16
    ba = ba_ref[...]                            # (1, 1) f32
    logit_b = jnp.dot(wa, eb.astype(jnp.bfloat16),
                      preferred_element_type=jnp.float32) + ba     # (1, S)
    logit_a = jnp.dot(wa, ea.astype(jnp.bfloat16),
                      preferred_element_type=jnp.float32) + ba
    att_b = jax.nn.sigmoid(logit_b)             # (1, S) f32
    att_a = jax.nn.sigmoid(logit_a)

    # attended_k[c] = sum_s att[s] * x_k[c, s]  (spatial sum, per channel)
    o1_ref[0] = jnp.sum(x1 * att_b, axis=1, keepdims=True)         # (K1, 1)
    o2_ref[0] = jnp.sum(x2 * att_a, axis=1, keepdims=True)


# ---------------------------------------------------------------------------
# Pallas wrapper + glue
# ---------------------------------------------------------------------------

def dual_sam_forward(input_1, input_2, params):
    bs, t, K1, H, W = input_1.shape
    N = bs * t
    S = H * W
    D = params['w_embed'].shape[1]
    n_groups = params['n_groups']

    # NCHW -> (N, C, S): pure reshape, no transpose / extra HBM traffic.
    x1 = input_1.reshape(N, K1, S).astype(jnp.float32)
    x2 = input_2.reshape(N, K1, S).astype(jnp.float32)

    # split the 1x1 conv weight: rows [0, K1) multiply the raw stream, rows
    # [K1, 2K1) multiply the diff stream (this implements the channel concat).
    w = params['w_embed'].astype(jnp.float32)            # (2*K1, D)
    w_top = jnp.transpose(w[:K1]).astype(jnp.bfloat16)   # (D, K1)
    w_bot = jnp.transpose(w[K1:]).astype(jnp.bfloat16)   # (D, K1)
    b_emb = params['b_embed'].reshape(D, 1).astype(jnp.float32)

    cpg = D // n_groups
    ch_group = jnp.arange(D) // cpg
    gsel = (ch_group[:, None] == jnp.arange(n_groups)[None, :]).astype(jnp.float32)
    gsel_t = jnp.transpose(gsel)                         # (G, D)

    gamma = params['gn_gamma'].reshape(D, 1).astype(jnp.float32)
    beta = params['gn_beta'].reshape(D, 1).astype(jnp.float32)
    w_att = params['w_att'].reshape(1, D).astype(jnp.bfloat16)
    b_att = params['b_att'].reshape(1, 1).astype(jnp.float32)

    kern = functools.partial(_dual_sam_kernel, eps=1e-5)
    full = lambda shape: pl.BlockSpec(shape, lambda n, _s=len(shape): (0,) * _s)
    x_spec = pl.BlockSpec((1, K1, S), lambda n: (n, 0, 0))
    out_spec = pl.BlockSpec((1, K1, 1), lambda n: (n, 0, 0))

    att1, att2 = pl.pallas_call(
        kern,
        out_shape=(jax.ShapeDtypeStruct((N, K1, 1), jnp.float32),
                   jax.ShapeDtypeStruct((N, K1, 1), jnp.float32)),
        grid=(N,),
        in_specs=[
            x_spec, x_spec,
            full((D, K1)), full((D, K1)), full((D, 1)),
            full((D, 1)), full((D, 1)),
            full((D, n_groups)), full((n_groups, D)),
            full((1, D)), full((1, 1)),
        ],
        out_specs=(out_spec, out_spec),
        compiler_params=pltpu.CompilerParams(dimension_semantics=("parallel",)),
    )(x1, x2, w_top, w_bot, b_emb, gamma, beta, gsel, gsel_t, w_att, b_att)

    a1 = att1[:, :, 0].reshape(bs, t, K1)
    a2 = att2[:, :, 0].reshape(bs, t, K1)
    return jnp.concatenate([a1, a2 - a1, a2], axis=-1)             # (bs, t, 3*K1)


# ---------------------------------------------------------------------------
# Pure-JAX reference (mirrors the PyTorch module, f32 throughout)
# ---------------------------------------------------------------------------

def dual_sam_reference(input_1, input_2, params):
    bs, t, K1, H, W = input_1.shape
    N = bs * t
    D = params['w_embed'].shape[1]
    G = params['n_groups']
    x1 = input_1.reshape(N, K1, H, W).astype(jnp.float32)
    x2 = input_2.reshape(N, K1, H, W).astype(jnp.float32)
    xd = x2 - x1
    xb = jnp.concatenate([x1, xd], axis=1)
    xa = jnp.concatenate([x2, xd], axis=1)

    def embed(x):
        y = jnp.einsum('nchw,cd->ndhw', x, params['w_embed'])
        y = y + params['b_embed'][None, :, None, None]
        yg = y.reshape(N, G, D // G, H, W)
        mu = yg.mean(axis=(2, 3, 4), keepdims=True)
        var = yg.var(axis=(2, 3, 4), keepdims=True)
        yn = ((yg - mu) / jnp.sqrt(var + 1e-5)).reshape(N, D, H, W)
        yn = yn * params['gn_gamma'][None, :, None, None] + params['gn_beta'][None, :, None, None]
        return jnp.maximum(yn, 0.0)

    eb, ea = embed(xb), embed(xa)
    att_b = jax.nn.sigmoid(jnp.einsum('ndhw,d->nhw', eb, params['w_att'][:, 0]) + params['b_att'][0])
    att_a = jax.nn.sigmoid(jnp.einsum('ndhw,d->nhw', ea, params['w_att'][:, 0]) + params['b_att'][0])
    a1 = (x1 * att_b[:, None]).sum(axis=(2, 3)).reshape(bs, t, K1)
    a2 = (x2 * att_a[:, None]).sum(axis=(2, 3)).reshape(bs, t, K1)
    return jnp.concatenate([a1, a2 - a1, a2], axis=-1)


# ---------------------------------------------------------------------------
# Deterministic parameter init
# ---------------------------------------------------------------------------

def init_params(key, input_dim, dim):
    k1, k2, k3, k4 = jax.random.split(key, 4)
    be = 1.0 / (input_dim ** 0.5)
    ba = 1.0 / (dim ** 0.5)
    return {
        # 1x1 conv weights stored channels-in x channels-out
        'w_embed': jax.random.uniform(k1, (input_dim, dim), jnp.float32, -be, be),
        'b_embed': jax.random.uniform(k2, (dim,), jnp.float32, -be, be),
        'gn_gamma': jnp.ones((dim,), jnp.float32),
        'gn_beta': jnp.zeros((dim,), jnp.float32),
        'w_att': jax.random.uniform(k3, (dim, 1), jnp.float32, -ba, ba),
        'b_att': jax.random.uniform(k4, (1,), jnp.float32, -ba, ba),
        'n_groups': 32,
    }


# ---------------------------------------------------------------------------

if __name__ == "__main__":
    key = jax.random.PRNGKey(0)
    batch_size, t, K1, H, W = 2, 2, 4, 16, 16
    input_dim = 2 * K1          # embed conv sees cat([x, diff]) -> 2*K1 channels
    dim = 64                    # must be divisible by 32 (GroupNorm groups)

    k1, k2, k3 = jax.random.split(key, 3)
    input_1 = jax.random.normal(k1, (batch_size, t, K1, H, W), jnp.float32)
    input_2 = jax.random.normal(k2, (batch_size, t, K1, H, W), jnp.float32)
    params = init_params(k3, input_dim, dim)

    out = dual_sam_forward(input_1, input_2, params)
    out = jax.block_until_ready(out)

    assert out.shape == (batch_size, t, 3 * K1), out.shape
    assert bool(jnp.all(jnp.isfinite(out)))

    ref = dual_sam_reference(input_1, input_2, params)
    assert bool(jnp.allclose(out, ref, rtol=5e-2, atol=2e-1)), (
        float(jnp.max(jnp.abs(out - ref))))

    print("KERNEL_OK")
</pallas_src>

<mosaic_0001>
module attributes {stable_mosaic.version = 11 : i64} {
  func.func @_dual_sam_kernel(%arg0: i32, %arg1: memref<1x4x256xf32, #tpu.memory_space<vmem>>, %arg2: memref<1x4x256xf32, #tpu.memory_space<vmem>>, %arg3: memref<64x4xbf16, #tpu.memory_space<vmem>>, %arg4: memref<64x4xbf16, #tpu.memory_space<vmem>>, %arg5: memref<64x1xf32, #tpu.memory_space<vmem>>, %arg6: memref<64x1xf32, #tpu.memory_space<vmem>>, %arg7: memref<64x1xf32, #tpu.memory_space<vmem>>, %arg8: memref<64x32xf32, #tpu.memory_space<vmem>>, %arg9: memref<32x64xf32, #tpu.memory_space<vmem>>, %arg10: memref<1x64xbf16, #tpu.memory_space<vmem>>, %arg11: memref<1x1xf32, #tpu.memory_space<vmem>>, %arg12: memref<1x4x1xf32, #tpu.memory_space<vmem>>, %arg13: memref<1x4x1xf32, #tpu.memory_space<vmem>>) attributes {dimension_semantics = [#tpu.dimension_semantics<parallel>], iteration_bounds = array<i64: 4>, scalar_prefetch = 0 : i64, scratch_operands = 0 : i64, tpu.core_type = #tpu.core_type<tc>, window_params = [{transform_indices = @transform_0, window_bounds = array<i64: 1, 4, 256>}, {transform_indices = @transform_1, window_bounds = array<i64: 1, 4, 256>}, {pipeline_mode = #tpu.pipeline_mode<synchronous>, transform_indices = @transform_2, window_bounds = array<i64: 64, 4>}, {pipeline_mode = #tpu.pipeline_mode<synchronous>, transform_indices = @transform_3, window_bounds = array<i64: 64, 4>}, {pipeline_mode = #tpu.pipeline_mode<synchronous>, transform_indices = @transform_4, window_bounds = array<i64: 64, 1>}, {pipeline_mode = #tpu.pipeline_mode<synchronous>, transform_indices = @transform_5, window_bounds = array<i64: 64, 1>}, {pipeline_mode = #tpu.pipeline_mode<synchronous>, transform_indices = @transform_6, window_bounds = array<i64: 64, 1>}, {pipeline_mode = #tpu.pipeline_mode<synchronous>, transform_indices = @transform_7, window_bounds = array<i64: 64, 32>}, {pipeline_mode = #tpu.pipeline_mode<synchronous>, transform_indices = @transform_8, window_bounds = array<i64: 32, 64>}, {pipeline_mode = #tpu.pipeline_mode<synchronous>, transform_indices = @transform_9, window_bounds = array<i64: 1, 64>}, {pipeline_mode = #tpu.pipeline_mode<synchronous>, transform_indices = @transform_10, window_bounds = array<i64: 1, 1>}, {transform_indices = @transform_11, window_bounds = array<i64: 1, 4, 1>}, {transform_indices = @transform_12, window_bounds = array<i64: 1, 4, 1>}]} {
    %c0 = arith.constant 0 : index
    %c0_0 = arith.constant 0 : index
    %c0_1 = arith.constant 0 : index
    %0 = vector.load %arg1[%c0, %c0_0, %c0_1] : memref<1x4x256xf32, #tpu.memory_space<vmem>>, vector<1x4x256xf32>
    %1 = vector.shape_cast %0 : vector<1x4x256xf32> to vector<4x256xf32>
    %c0_2 = arith.constant 0 : index
    %c0_3 = arith.constant 0 : index
    %c0_4 = arith.constant 0 : index
    %2 = vector.load %arg2[%c0_2, %c0_3, %c0_4] : memref<1x4x256xf32, #tpu.memory_space<vmem>>, vector<1x4x256xf32>
    %3 = vector.shape_cast %2 : vector<1x4x256xf32> to vector<4x256xf32>
    %4 = arith.subf %3, %1 : vector<4x256xf32>
    %c0_5 = arith.constant 0 : index
    %c0_6 = arith.constant 0 : index
    %5 = vector.load %arg3[%c0_5, %c0_6] : memref<64x4xbf16, #tpu.memory_space<vmem>>, vector<64x4xbf16>
    %c0_7 = arith.constant 0 : index
    %c0_8 = arith.constant 0 : index
    %6 = vector.load %arg4[%c0_7, %c0_8] : memref<64x4xbf16, #tpu.memory_space<vmem>>, vector<64x4xbf16>
    %c0_9 = arith.constant 0 : index
    %c0_10 = arith.constant 0 : index
    %7 = vector.load %arg5[%c0_9, %c0_10] : memref<64x1xf32, #tpu.memory_space<vmem>>, vector<64x1xf32>
    %8 = arith.truncf %4 : vector<4x256xf32> to vector<4x256xbf16>
    %cst = arith.constant dense<0.000000e+00> : vector<64x256xf32>
    %9 = tpu.matmul %6, %8, %cst {dimension_numbers = #tpu.dot_dimension_numbers<[1], [0], [0], [1], [0, 0, 1, 1], [], []>} : vector<64x4xbf16>, vector<4x256xbf16>, vector<64x256xf32> -> vector<64x256xf32>
    %10 = arith.truncf %1 : vector<4x256xf32> to vector<4x256xbf16>
    %cst_11 = arith.constant dense<0.000000e+00> : vector<64x256xf32>
    %11 = tpu.matmul %5, %10, %cst_11 {dimension_numbers = #tpu.dot_dimension_numbers<[1], [0], [0], [1], [0, 0, 1, 1], [], []>} : vector<64x4xbf16>, vector<4x256xbf16>, vector<64x256xf32> -> vector<64x256xf32>
    %12 = arith.addf %11, %9 : vector<64x256xf32>
    %13 = vector.broadcast %7 : vector<64x1xf32> to vector<64x256xf32>
    %14 = arith.addf %12, %13 : vector<64x256xf32>
    %15 = arith.truncf %3 : vector<4x256xf32> to vector<4x256xbf16>
    %cst_12 = arith.constant dense<0.000000e+00> : vector<64x256xf32>
    %16 = tpu.matmul %5, %15, %cst_12 {dimension_numbers = #tpu.dot_dimension_numbers<[1], [0], [0], [1], [0, 0, 1, 1], [], []>} : vector<64x4xbf16>, vector<4x256xbf16>, vector<64x256xf32> -> vector<64x256xf32>
    %17 = arith.addf %16, %9 : vector<64x256xf32>
    %18 = vector.broadcast %7 : vector<64x1xf32> to vector<64x256xf32>
    %19 = arith.addf %17, %18 : vector<64x256xf32>
    %c0_13 = arith.constant 0 : index
    %c0_14 = arith.constant 0 : index
    %20 = vector.load %arg8[%c0_13, %c0_14] : memref<64x32xf32, #tpu.memory_space<vmem>>, vector<64x32xf32>
    %c0_15 = arith.constant 0 : index
    %c0_16 = arith.constant 0 : index
    %21 = vector.load %arg9[%c0_15, %c0_16] : memref<32x64xf32, #tpu.memory_space<vmem>>, vector<32x64xf32>
    %c0_17 = arith.constant 0 : index
    %c0_18 = arith.constant 0 : index
    %22 = vector.load %arg6[%c0_17, %c0_18] : memref<64x1xf32, #tpu.memory_space<vmem>>, vector<64x1xf32>
    %c0_19 = arith.constant 0 : index
    %c0_20 = arith.constant 0 : index
    %23 = vector.load %arg7[%c0_19, %c0_20] : memref<64x1xf32, #tpu.memory_space<vmem>>, vector<64x1xf32>
    %cst_21 = arith.constant dense<0.000000e+00> : vector<64xf32>
    %24 = vector.multi_reduction <add>, %14, %cst_21 [1] : vector<64x256xf32> to vector<64xf32>
    %25 = vector.shape_cast %24 : vector<64xf32> to vector<64x1xf32>
    %26 = arith.mulf %14, %14 : vector<64x256xf32>
    %cst_22 = arith.constant dense<0.000000e+00> : vector<64xf32>
    %27 = vector.multi_reduction <add>, %26, %cst_22 [1] : vector<64x256xf32> to vector<64xf32>
    %28 = vector.shape_cast %27 : vector<64xf32> to vector<64x1xf32>
    %cst_23 = arith.constant dense<0.000000e+00> : vector<32x1xf32>
    %29 = tpu.matmul %21, %25, %cst_23 {dimension_numbers = #tpu.dot_dimension_numbers<[1], [0], [0], [1], [0, 0, 1, 1], [], []>} : vector<32x64xf32>, vector<64x1xf32>, vector<32x1xf32> -> vector<32x1xf32>
    %cst_24 = arith.constant 0.001953125 : f32
    %30 = vector.broadcast %cst_24 : f32 to vector<32x1xf32>
    %31 = arith.mulf %29, %30 : vector<32x1xf32>
    %cst_25 = arith.constant dense<0.000000e+00> : vector<32x1xf32>
    %32 = tpu.matmul %21, %28, %cst_25 {dimension_numbers = #tpu.dot_dimension_numbers<[1], [0], [0], [1], [0, 0, 1, 1], [], []>} : vector<32x64xf32>, vector<64x1xf32>, vector<32x1xf32> -> vector<32x1xf32>
    %cst_26 = arith.constant 0.001953125 : f32
    %33 = vector.broadcast %cst_26 : f32 to vector<32x1xf32>
    %34 = arith.mulf %32, %33 : vector<32x1xf32>
    %35 = arith.mulf %31, %31 : vector<32x1xf32>
    %36 = arith.subf %34, %35 : vector<32x1xf32>
    %cst_27 = arith.constant 9.99999974E-6 : f32
    %37 = vector.broadcast %cst_27 : f32 to vector<32x1xf32>
    %38 = arith.addf %36, %37 : vector<32x1xf32>
    %39 = math.rsqrt %38 : vector<32x1xf32>
    %cst_28 = arith.constant dense<0.000000e+00> : vector<64x1xf32>
    %40 = tpu.matmul %20, %31, %cst_28 {dimension_numbers = #tpu.dot_dimension_numbers<[1], [0], [0], [1], [0, 0, 1, 1], [], []>} : vector<64x32xf32>, vector<32x1xf32>, vector<64x1xf32> -> vector<64x1xf32>
    %cst_29 = arith.constant dense<0.000000e+00> : vector<64x1xf32>
    %41 = tpu.matmul %20, %39, %cst_29 {dimension_numbers = #tpu.dot_dimension_numbers<[1], [0], [0], [1], [0, 0, 1, 1], [], []>} : vector<64x32xf32>, vector<32x1xf32>, vector<64x1xf32> -> vector<64x1xf32>
    %42 = arith.mulf %41, %22 : vector<64x1xf32>
    %43 = arith.mulf %40, %42 : vector<64x1xf32>
    %44 = arith.subf %23, %43 : vector<64x1xf32>
    %45 = vector.broadcast %42 : vector<64x1xf32> to vector<64x256xf32>
    %46 = arith.mulf %14, %45 : vector<64x256xf32>
    %47 = vector.broadcast %44 : vector<64x1xf32> to vector<64x256xf32>
    %48 = arith.addf %46, %47 : vector<64x256xf32>
    %cst_30 = arith.constant 0.000000e+00 : f32
    %49 = vector.broadcast %cst_30 : f32 to vector<64x256xf32>
    %50 = arith.maximumf %48, %49 : vector<64x256xf32>
    %cst_31 = arith.constant dense<0.000000e+00> : vector<64xf32>
    %51 = vector.multi_reduction <add>, %19, %cst_31 [1] : vector<64x256xf32> to vector<64xf32>
    %52 = vector.shape_cast %51 : vector<64xf32> to vector<64x1xf32>
    %53 = arith.mulf %19, %19 : vector<64x256xf32>
    %cst_32 = arith.constant dense<0.000000e+00> : vector<64xf32>
    %54 = vector.multi_reduction <add>, %53, %cst_32 [1] : vector<64x256xf32> to vector<64xf32>
    %55 = vector.shape_cast %54 : vector<64xf32> to vector<64x1xf32>
    %cst_33 = arith.constant dense<0.000000e+00> : vector<32x1xf32>
    %56 = tpu.matmul %21, %52, %cst_33 {dimension_numbers = #tpu.dot_dimension_numbers<[1], [0], [0], [1], [0, 0, 1, 1], [], []>} : vector<32x64xf32>, vector<64x1xf32>, vector<32x1xf32> -> vector<32x1xf32>
    %cst_34 = arith.constant 0.001953125 : f32
    %57 = vector.broadcast %cst_34 : f32 to vector<32x1xf32>
    %58 = arith.mulf %56, %57 : vector<32x1xf32>
    %cst_35 = arith.constant dense<0.000000e+00> : vector<32x1xf32>
    %59 = tpu.matmul %21, %55, %cst_35 {dimension_numbers = #tpu.dot_dimension_numbers<[1], [0], [0], [1], [0, 0, 1, 1], [], []>} : vector<32x64xf32>, vector<64x1xf32>, vector<32x1xf32> -> vector<32x1xf32>
    %cst_36 = arith.constant 0.001953125 : f32
    %60 = vector.broadcast %cst_36 : f32 to vector<32x1xf32>
    %61 = arith.mulf %59, %60 : vector<32x1xf32>
    %62 = arith.mulf %58, %58 : vector<32x1xf32>
    %63 = arith.subf %61, %62 : vector<32x1xf32>
    %cst_37 = arith.constant 9.99999974E-6 : f32
    %64 = vector.broadcast %cst_37 : f32 to vector<32x1xf32>
    %65 = arith.addf %63, %64 : vector<32x1xf32>
    %66 = math.rsqrt %65 : vector<32x1xf32>
    %cst_38 = arith.constant dense<0.000000e+00> : vector<64x1xf32>
    %67 = tpu.matmul %20, %58, %cst_38 {dimension_numbers = #tpu.dot_dimension_numbers<[1], [0], [0], [1], [0, 0, 1, 1], [], []>} : vector<64x32xf32>, vector<32x1xf32>, vector<64x1xf32> -> vector<64x1xf32>
    %cst_39 = arith.constant dense<0.000000e+00> : vector<64x1xf32>
    %68 = tpu.matmul %20, %66, %cst_39 {dimension_numbers = #tpu.dot_dimension_numbers<[1], [0], [0], [1], [0, 0, 1, 1], [], []>} : vector<64x32xf32>, vector<32x1xf32>, vector<64x1xf32> -> vector<64x1xf32>
    %69 = arith.mulf %68, %22 : vector<64x1xf32>
    %70 = arith.mulf %67, %69 : vector<64x1xf32>
    %71 = arith.subf %23, %70 : vector<64x1xf32>
    %72 = vector.broadcast %69 : vector<64x1xf32> to vector<64x256xf32>
    %73 = arith.mulf %19, %72 : vector<64x256xf32>
    %74 = vector.broadcast %71 : vector<64x1xf32> to vector<64x256xf32>
    %75 = arith.addf %73, %74 : vector<64x256xf32>
    %cst_40 = arith.constant 0.000000e+00 : f32
    %76 = vector.broadcast %cst_40 : f32 to vector<64x256xf32>
    %77 = arith.maximumf %75, %76 : vector<64x256xf32>
    %c0_41 = arith.constant 0 : index
    %c0_42 = arith.constant 0 : index
    %78 = vector.load %arg10[%c0_41, %c0_42] : memref<1x64xbf16, #tpu.memory_space<vmem>>, vector<1x64xbf16>
    %c0_43 = arith.constant 0 : index
    %c0_44 = arith.constant 0 : index
    %79 = vector.load %arg11[%c0_43, %c0_44] : memref<1x1xf32, #tpu.memory_space<vmem>>, vector<1x1xf32>
    %80 = arith.truncf %50 : vector<64x256xf32> to vector<64x256xbf16>
    %cst_45 = arith.constant dense<0.000000e+00> : vector<1x256xf32>
    %81 = tpu.matmul %78, %80, %cst_45 {dimension_numbers = #tpu.dot_dimension_numbers<[1], [0], [0], [1], [0, 0, 1, 1], [], []>} : vector<1x64xbf16>, vector<64x256xbf16>, vector<1x256xf32> -> vector<1x256xf32>
    %82 = vector.broadcast %79 : vector<1x1xf32> to vector<1x256xf32>
    %83 = arith.addf %81, %82 : vector<1x256xf32>
    %84 = arith.truncf %77 : vector<64x256xf32> to vector<64x256xbf16>
    %cst_46 = arith.constant dense<0.000000e+00> : vector<1x256xf32>
    %85 = tpu.matmul %78, %84, %cst_46 {dimension_numbers = #tpu.dot_dimension_numbers<[1], [0], [0], [1], [0, 0, 1, 1], [], []>} : vector<1x64xbf16>, vector<64x256xbf16>, vector<1x256xf32> -> vector<1x256xf32>
    %86 = vector.broadcast %79 : vector<1x1xf32> to vector<1x256xf32>
    %87 = arith.addf %85, %86 : vector<1x256xf32>
    %88 = arith.negf %83 : vector<1x256xf32>
    %89 = math.exp %88 : vector<1x256xf32>
    %cst_47 = arith.constant 1.000000e+00 : f32
    %90 = vector.broadcast %cst_47 : f32 to vector<1x256xf32>
    %91 = arith.addf %90, %89 : vector<1x256xf32>
    %92 = arith.divf %90, %91 : vector<1x256xf32>
    %93 = arith.negf %87 : vector<1x256xf32>
    %94 = math.exp %93 : vector<1x256xf32>
    %cst_48 = arith.constant 1.000000e+00 : f32
    %95 = vector.broadcast %cst_48 : f32 to vector<1x256xf32>
    %96 = arith.addf %95, %94 : vector<1x256xf32>
    %97 = arith.divf %95, %96 : vector<1x256xf32>
    %98 = vector.broadcast %92 : vector<1x256xf32> to vector<4x256xf32>
    %99 = arith.mulf %1, %98 : vector<4x256xf32>
    %cst_49 = arith.constant dense<0.000000e+00> : vector<4xf32>
    %100 = vector.multi_reduction <add>, %99, %cst_49 [1] : vector<4x256xf32> to vector<4xf32>
    %101 = vector.shape_cast %100 : vector<4xf32> to vector<4x1xf32>
    %c0_50 = arith.constant 0 : index
    %c0_51 = arith.constant 0 : index
    %c0_52 = arith.constant 0 : index
    %102 = vector.load %arg12[%c0_50, %c0_51, %c0_52] : memref<1x4x1xf32, #tpu.memory_space<vmem>>, vector<1x4x1xf32>
    %103 = vector.shape_cast %102 : vector<1x4x1xf32> to vector<4x1xf32>
    %104 = vector.shape_cast %101 : vector<4x1xf32> to vector<1x4x1xf32>
    tpu.vector_store %arg12[%c0_50, %c0_51, %c0_52], %104 {strides = array<i32>} : memref<1x4x1xf32, #tpu.memory_space<vmem>>, vector<1x4x1xf32>,
    %105 = vector.broadcast %97 : vector<1x256xf32> to vector<4x256xf32>
    %106 = arith.mulf %3, %105 : vector<4x256xf32>
    %cst_53 = arith.constant dense<0.000000e+00> : vector<4xf32>
    %107 = vector.multi_reduction <add>, %106, %cst_53 [1] : vector<4x256xf32> to vector<4xf32>
    %108 = vector.shape_cast %107 : vector<4xf32> to vector<4x1xf32>
    %c0_54 = arith.constant 0 : index
    %c0_55 = arith.constant 0 : index
    %c0_56 = arith.constant 0 : index
    %109 = vector.load %arg13[%c0_54, %c0_55, %c0_56] : memref<1x4x1xf32, #tpu.memory_space<vmem>>, vector<1x4x1xf32>
    %110 = vector.shape_cast %109 : vector<1x4x1xf32> to vector<4x1xf32>
    %111 = vector.shape_cast %108 : vector<4x1xf32> to vector<1x4x1xf32>
    tpu.vector_store %arg13[%c0_54, %c0_55, %c0_56], %111 {strides = array<i32>} : memref<1x4x1xf32, #tpu.memory_space<vmem>>, vector<1x4x1xf32>,
    return
  }
  func.func @transform_0(%arg0: i32) -> (i32, i32, i32) {
    %c0_i32 = arith.constant 0 : i32
    %c0_i32_0 = arith.constant 0 : i32
    %c0_i32_1 = arith.constant 0 : i32
    return %arg0, %c0_i32, %c0_i32_0 : i32, i32, i32
  }
  func.func @transform_1(%arg0: i32) -> (i32, i32, i32) {
    %c0_i32 = arith.constant 0 : i32
    %c0_i32_0 = arith.constant 0 : i32
    %c0_i32_1 = arith.constant 0 : i32
    return %arg0, %c0_i32, %c0_i32_0 : i32, i32, i32
  }
  func.func @transform_2(%arg0: i32) -> (i32, i32) {
    %c0_i32 = arith.constant 0 : i32
    %c0_i32_0 = arith.constant 0 : i32
    %c0_i32_1 = arith.constant 0 : i32
    return %c0_i32, %c0_i32_0 : i32, i32
  }
  func.func @transform_3(%arg0: i32) -> (i32, i32) {
    %c0_i32 = arith.constant 0 : i32
    %c0_i32_0 = arith.constant 0 : i32
    %c0_i32_1 = arith.constant 0 : i32
    return %c0_i32, %c0_i32_0 : i32, i32
  }
  func.func @transform_4(%arg0: i32) -> (i32, i32) {
    %c0_i32 = arith.constant 0 : i32
    %c0_i32_0 = arith.constant 0 : i32
    %c0_i32_1 = arith.constant 0 : i32
    return %c0_i32, %c0_i32_0 : i32, i32
  }
  func.func @transform_5(%arg0: i32) -> (i32, i32) {
    %c0_i32 = arith.constant 0 : i32
    %c0_i32_0 = arith.constant 0 : i32
    %c0_i32_1 = arith.constant 0 : i32
    return %c0_i32, %c0_i32_0 : i32, i32
  }
  func.func @transform_6(%arg0: i32) -> (i32, i32) {
    %c0_i32 = arith.constant 0 : i32
    %c0_i32_0 = arith.constant 0 : i32
    %c0_i32_1 = arith.constant 0 : i32
    return %c0_i32, %c0_i32_0 : i32, i32
  }
  func.func @transform_7(%arg0: i32) -> (i32, i32) {
    %c0_i32 = arith.constant 0 : i32
    %c0_i32_0 = arith.constant 0 : i32
    %c0_i32_1 = arith.constant 0 : i32
    return %c0_i32, %c0_i32_0 : i32, i32
  }
  func.func @transform_8(%arg0: i32) -> (i32, i32) {
    %c0_i32 = arith.constant 0 : i32
    %c0_i32_0 = arith.constant 0 : i32
    %c0_i32_1 = arith.constant 0 : i32
    return %c0_i32, %c0_i32_0 : i32, i32
  }
  func.func @transform_9(%arg0: i32) -> (i32, i32) {
    %c0_i32 = arith.constant 0 : i32
    %c0_i32_0 = arith.constant 0 : i32
    %c0_i32_1 = arith.constant 0 : i32
    return %c0_i32, %c0_i32_0 : i32, i32
  }
  func.func @transform_10(%arg0: i32) -> (i32, i32) {
    %c0_i32 = arith.constant 0 : i32
    %c0_i32_0 = arith.constant 0 : i32
    %c0_i32_1 = arith.constant 0 : i32
    return %c0_i32, %c0_i32_0 : i32, i32
  }
  func.func @transform_11(%arg0: i32) -> (i32, i32, i32) {
    %c0_i32 = arith.constant 0 : i32
    %c0_i32_0 = arith.constant 0 : i32
    %c0_i32_1 = arith.constant 0 : i32
    return %arg0, %c0_i32, %c0_i32_0 : i32, i32, i32
  }
  func.func @transform_12(%arg0: i32) -> (i32, i32, i32) {
    %c0_i32 = arith.constant 0 : i32
    %c0_i32_0 = arith.constant 0 : i32
    %c0_i32_1 = arith.constant 0 : i32
    return %arg0, %c0_i32, %c0_i32_0 : i32, i32, i32
  }
}

</mosaic_0001>

<llo_original>
// kernel: tpu_custom_call.1
$region0: #{tpu_custom_call.1}
  #allocation0 [shape = 'u32[]', space=smem, size = 0x4, offset = 0x4, fixed_abs, tag = 'smem constant byte address 0x4 - core index']
  #allocation1 [shape = 'u32[144,128]{1,0:T(1,128)}', space=vmem, size = 0x12000, scoped, tag = 'internal scratch']
  #allocation2 [shape = 'f32[1,1]{1,0:T(1,128)S(1)}', space=vmem, size = 0x200, scoped, tag = 'scoped memory for tpu_custom_call.1']
  %s0 = inlined_call_operand.vmem [shape: f32[4,4,256], index: 0, kind: input, shape index: {}]
  %s1 = inlined_call_operand.vmem [shape: f32[4,4,256], index: 1, kind: input, shape index: {}]
  %s2 = inlined_call_operand.vmem [shape: bf16[64,4], index: 2, kind: input, shape index: {}]
  %s3 = inlined_call_operand.vmem [shape: bf16[64,4], index: 3, kind: input, shape index: {}]
  %s4 = inlined_call_operand.vmem [shape: f32[64,1], index: 4, kind: input, shape index: {}]
  %s5 = inlined_call_operand.vmem [shape: f32[64,1], index: 5, kind: input, shape index: {}]
  %s6 = inlined_call_operand.vmem [shape: f32[64,1], index: 6, kind: input, shape index: {}]
  %s7 = inlined_call_operand.vmem [shape: f32[64,32], index: 7, kind: input, shape index: {}]
  %s8 = inlined_call_operand.vmem [shape: f32[32,64], index: 8, kind: input, shape index: {}]
  %s9 = inlined_call_operand.vmem [shape: bf16[1,64], index: 9, kind: input, shape index: {}]
  %s10 = inlined_call_operand.<no memory space> [shape: f32[1,1], index: 10, kind: input, shape index: {}]
  %s11 = inlined_call_operand.vmem [shape: f32[4,4,1], index: 11, kind: output, shape index: {0}]
  %s12 = inlined_call_operand.vmem [shape: f32[4,4,1], index: 12, kind: output, shape index: {1}]
  %13 = xla_tuple %s11, %s12
  %s14 = sld [smem:[#allocation0]]
  $region85: #{tpu_custom_call.1} parent=0
    _
  %s16 = ssub.s32 1, %s14
  %s17 = scalar_select 0, %s16, %s14
  %v18 = vstv %s10
  %19 = vst [vmem:[#allocation2] sm:$0x1] %v18
  loop: start=0, step=1, limit=6
  $region2: #{tpu_custom_call.1} parent=0 // loop_pre_header
    _
  $region3: #{tpu_custom_call.1} parent=0 // loop_header
    %s21 = sphi 0, %s25
    %p22 = scmp.ge.s32.totalorder %s21, 6
    %s31 = sphi 0, %s33
    %s34 = sphi 0, %s31
    %s35 = sphi 0, %s34
    %s51 = sphi 0, %s35
    %s57 = sphi 0, %s59
    %s60 = sphi 0, %s57
    %s61 = sphi 0, %s60
    %s77 = sphi 0, %s61
    %s81 = sphi 0, %s81
    %s83 = sphi 0, %s81
    %s84 = sphi 0, %s83
    %s98 = sphi 0, %s84
    %s102 = sphi 0, %s102
    %s104 = sphi 0, %s102
    %s105 = sphi 0, %s104
    %s119 = sphi 0, %s105
    %s123 = sphi 0, %s123
    %s125 = sphi 0, %s123
    %s126 = sphi 0, %s125
    %s140 = sphi 0, %s126
    %s144 = sphi 0, %s144
    %s146 = sphi 0, %s144
    %s147 = sphi 0, %s146
    %s161 = sphi 0, %s147
    %s165 = sphi 0, %s165
    %s167 = sphi 0, %s165
    %s168 = sphi 0, %s167
    %s182 = sphi 0, %s168
    %s186 = sphi 0, %s186
    %s188 = sphi 0, %s186
    %s189 = sphi 0, %s188
    %s203 = sphi 0, %s189
    %s207 = sphi 0, %s207
    %s209 = sphi 0, %s207
    %s210 = sphi 0, %s209
    %s224 = sphi 0, %s210
    %s228 = sphi 0, %s228
    %s230 = sphi 0, %s228
    %s231 = sphi 0, %s230
    %s245 = sphi 0, %s231
    %s249 = sphi 0, %s249
    %s251 = sphi 0, %s249
    %s252 = sphi 0, %s251
    %s266 = sphi 0, %s252
    %s272 = sphi 0, %s274
    %s275 = sphi 0, %s272
    %s276 = sphi 0, %s275
    %s292 = sphi 0, %s276
    %s298 = sphi 0, %s300
    %s301 = sphi 0, %s298
    %s302 = sphi 0, %s301
    %s318 = sphi 0, %s302
  $region4: #{tpu_custom_call.1} parent=0 // loop_header_branch
    %24 = sbr.rel (%p22) target = $region8
  $region5: #{tpu_custom_call.1} parent=0 // loop_body
    %s26 = ssub.s32 %s21, 1
    %s27 = ssub.s32 %s21, 2
    %s28 = sadd.s32 %s21, 1
    %s29 = ssub.s32 %s21, %s28
    %p30 = scmp.eq.s32.totalorder %s29, 0
    %s32 = sadd.s32 %s31, 1
    %s33 = scalar_select %p30, %s31, %s32
    %p36 = pneg %p30
    %p37 = scmp.eq.s32.totalorder %s21, 3
    %p38 = por %p36, %p37
    %p39 = scmp.ne.s32.totalorder %s31, %s34
    %p40 = scmp.eq.s32.totalorder %s21, 0
    %p41 = por %p39, %p40
    %p42 = scmp.ne.s32.totalorder %s31, %s34
    %p43 = scmp.eq.s32.totalorder %s26, 3
    %p44 = por %p42, %p43
    %p45 = scmp.ne.s32.totalorder %s34, %s35
    %p46 = scmp.eq.s32.totalorder %s26, 0
    %p47 = por %p45, %p46
    %p48 = scmp.ne.s32.totalorder %s34, %s35
    %p49 = scmp.eq.s32.totalorder %s27, 3
    %p50 = por %p48, %p49
    %p52 = scmp.ne.s32.totalorder %s35, %s51
    %p53 = scmp.eq.s32.totalorder %s27, 0
    %p54 = por %p52, %p53
    %s55 = ssub.s32 %s21, %s28
    %p56 = scmp.eq.s32.totalorder %s55, 0
    %s58 = sadd.s32 %s57, 1
    %s59 = scalar_select %p56, %s57, %s58
    %p62 = pneg %p56
    %p63 = scmp.eq.s32.totalorder %s21, 3
    %p64 = por %p62, %p63
    %p65 = scmp.ne.s32.totalorder %s57, %s60
    %p66 = scmp.eq.s32.totalorder %s21, 0
    %p67 = por %p65, %p66
    %p68 = scmp.ne.s32.totalorder %s57, %s60
    %p69 = scmp.eq.s32.totalorder %s26, 3
    %p70 = por %p68, %p69
    %p71 = scmp.ne.s32.totalorder %s60, %s61
    %p72 = scmp.eq.s32.totalorder %s26, 0
    %p73 = por %p71, %p72
    %p74 = scmp.ne.s32.totalorder %s60, %s61
    %p75 = scmp.eq.s32.totalorder %s27, 3
    %p76 = por %p74, %p75
    %p78 = scmp.ne.s32.totalorder %s61, %s77
    %p79 = scmp.eq.s32.totalorder %s27, 0
    %p80 = por %p78, %p79
    %s82 = sadd.s32 %s81, 1
    %p85 = scmp.eq.s32.totalorder %s21, 3
    %p86 = scmp.ne.s32.totalorder %s81, %s83
    %p87 = scmp.eq.s32.totalorder %s21, 0
    %p88 = por %p86, %p87
    %p89 = scmp.ne.s32.totalorder %s81, %s83
    %p90 = scmp.eq.s32.totalorder %s26, 3
    %p91 = por %p89, %p90
    %p92 = scmp.ne.s32.totalorder %s83, %s84
    %p93 = scmp.eq.s32.totalorder %s26, 0
    %p94 = por %p92, %p93
    %p95 = scmp.ne.s32.totalorder %s83, %s84
    %p96 = scmp.eq.s32.totalorder %s27, 3
    %p97 = por %p95, %p96
    %p99 = scmp.ne.s32.totalorder %s84, %s98
    %p100 = scmp.eq.s32.totalorder %s27, 0
    %p101 = por %p99, %p100
    %s103 = sadd.s32 %s102, 1
    %p106 = scmp.eq.s32.totalorder %s21, 3
    %p107 = scmp.ne.s32.totalorder %s102, %s104
    %p108 = scmp.eq.s32.totalorder %s21, 0
    %p109 = por %p107, %p108
    %p110 = scmp.ne.s32.totalorder %s102, %s104
    %p111 = scmp.eq.s32.totalorder %s26, 3
    %p112 = por %p110, %p111
    %p113 = scmp.ne.s32.totalorder %s104, %s105
    %p114 = scmp.eq.s32.totalorder %s26, 0
    %p115 = por %p113, %p114
    %p116 = scmp.ne.s32.totalorder %s104, %s105
    %p117 = scmp.eq.s32.totalorder %s27, 3
    %p118 = por %p116, %p117
    %p120 = scmp.ne.s32.totalorder %s105, %s119
    %p121 = scmp.eq.s32.totalorder %s27, 0
    %p122 = por %p120, %p121
    %s124 = sadd.s32 %s123, 1
    %p127 = scmp.eq.s32.totalorder %s21, 3
    %p128 = scmp.ne.s32.totalorder %s123, %s125
    %p129 = scmp.eq.s32.totalorder %s21, 0
    %p130 = por %p128, %p129
    %p131 = scmp.ne.s32.totalorder %s123, %s125
    %p132 = scmp.eq.s32.totalorder %s26, 3
    %p133 = por %p131, %p132
    %p134 = scmp.ne.s32.totalorder %s125, %s126
    %p135 = scmp.eq.s32.totalorder %s26, 0
    %p136 = por %p134, %p135
    %p137 = scmp.ne.s32.totalorder %s125, %s126
    %p138 = scmp.eq.s32.totalorder %s27, 3
    %p139 = por %p137, %p138
    %p141 = scmp.ne.s32.totalorder %s126, %s140
    %p142 = scmp.eq.s32.totalorder %s27, 0
    %p143 = por %p141, %p142
    %s145 = sadd.s32 %s144, 1
    %p148 = scmp.eq.s32.totalorder %s21, 3
    %p149 = scmp.ne.s32.totalorder %s144, %s146
    %p150 = scmp.eq.s32.totalorder %s21, 0
    %p151 = por %p149, %p150
    %p152 = scmp.ne.s32.totalorder %s144, %s146
    %p153 = scmp.eq.s32.totalorder %s26, 3
    %p154 = por %p152, %p153
    %p155 = scmp.ne.s32.totalorder %s146, %s147
    %p156 = scmp.eq.s32.totalorder %s26, 0
    %p157 = por %p155, %p156
    %p158 = scmp.ne.s32.totalorder %s146, %s147
    %p159 = scmp.eq.s32.totalorder %s27, 3
    %p160 = por %p158, %p159
    %p162 = scmp.ne.s32.totalorder %s147, %s161
    %p163 = scmp.eq.s32.totalorder %s27, 0
    %p164 = por %p162, %p163
    %s166 = sadd.s32 %s165, 1
    %p169 = scmp.eq.s32.totalorder %s21, 3
    %p170 = scmp.ne.s32.totalorder %s165, %s167
    %p171 = scmp.eq.s32.totalorder %s21, 0
    %p172 = por %p170, %p171
    %p173 = scmp.ne.s32.totalorder %s165, %s167
    %p174 = scmp.eq.s32.totalorder %s26, 3
    %p175 = por %p173, %p174
    %p176 = scmp.ne.s32.totalorder %s167, %s168
    %p177 = scmp.eq.s32.totalorder %s26, 0
    %p178 = por %p176, %p177
    %p179 = scmp.ne.s32.totalorder %s167, %s168
    %p180 = scmp.eq.s32.totalorder %s27, 3
    %p181 = por %p179, %p180
    %p183 = scmp.ne.s32.totalorder %s168, %s182
    %p184 = scmp.eq.s32.totalorder %s27, 0
    %p185 = por %p183, %p184
    %s187 = sadd.s32 %s186, 1
    %p190 = scmp.eq.s32.totalorder %s21, 3
    %p191 = scmp.ne.s32.totalorder %s186, %s188
    %p192 = scmp.eq.s32.totalorder %s21, 0
    %p193 = por %p191, %p192
    %p194 = scmp.ne.s32.totalorder %s186, %s188
    %p195 = scmp.eq.s32.totalorder %s26, 3
    %p196 = por %p194, %p195
    %p197 = scmp.ne.s32.totalorder %s188, %s189
    %p198 = scmp.eq.s32.totalorder %s26, 0
    %p199 = por %p197, %p198
    %p200 = scmp.ne.s32.totalorder %s188, %s189
    %p201 = scmp.eq.s32.totalorder %s27, 3
    %p202 = por %p200, %p201
    %p204 = scmp.ne.s32.totalorder %s189, %s203
    %p205 = scmp.eq.s32.totalorder %s27, 0
    %p206 = por %p204, %p205
    %s208 = sadd.s32 %s207, 1
    %p211 = scmp.eq.s32.totalorder %s21, 3
    %p212 = scmp.ne.s32.totalorder %s207, %s209
    %p213 = scmp.eq.s32.totalorder %s21, 0
    %p214 = por %p212, %p213
    %p215 = scmp.ne.s32.totalorder %s207, %s209
    %p216 = scmp.eq.s32.totalorder %s26, 3
    %p217 = por %p215, %p216
    %p218 = scmp.ne.s32.totalorder %s209, %s210
    %p219 = scmp.eq.s32.totalorder %s26, 0
    %p220 = por %p218, %p219
    %p221 = scmp.ne.s32.totalorder %s209, %s210
    %p222 = scmp.eq.s32.totalorder %s27, 3
    %p223 = por %p221, %p222
    %p225 = scmp.ne.s32.totalorder %s210, %s224
    %p226 = scmp.eq.s32.totalorder %s27, 0
    %p227 = por %p225, %p226
    %s229 = sadd.s32 %s228, 1
    %p232 = scmp.eq.s32.totalorder %s21, 3
    %p233 = scmp.ne.s32.totalorder %s228, %s230
    %p234 = scmp.eq.s32.totalorder %s21, 0
    %p235 = por %p233, %p234
    %p236 = scmp.ne.s32.totalorder %s228, %s230
    %p237 = scmp.eq.s32.totalorder %s26, 3
    %p238 = por %p236, %p237
    %p239 = scmp.ne.s32.totalorder %s230, %s231
    %p240 = scmp.eq.s32.totalorder %s26, 0
    %p241 = por %p239, %p240
    %p242 = scmp.ne.s32.totalorder %s230, %s231
    %p243 = scmp.eq.s32.totalorder %s27, 3
    %p244 = por %p242, %p243
    %p246 = scmp.ne.s32.totalorder %s231, %s245
    %p247 = scmp.eq.s32.totalorder %s27, 0
    %p248 = por %p246, %p247
    %s250 = sadd.s32 %s249, 1
    %p253 = scmp.eq.s32.totalorder %s21, 3
    %p254 = scmp.ne.s32.totalorder %s249, %s251
    %p255 = scmp.eq.s32.totalorder %s21, 0
    %p256 = por %p254, %p255
    %p257 = scmp.ne.s32.totalorder %s249, %s251
    %p258 = scmp.eq.s32.totalorder %s26, 3
    %p259 = por %p257, %p258
    %p260 = scmp.ne.s32.totalorder %s251, %s252
    %p261 = scmp.eq.s32.totalorder %s26, 0
    %p262 = por %p260, %p261
    %p263 = scmp.ne.s32.totalorder %s251, %s252
    %p264 = scmp.eq.s32.totalorder %s27, 3
    %p265 = por %p263, %p264
    %p267 = scmp.ne.s32.totalorder %s252, %s266
    %p268 = scmp.eq.s32.totalorder %s27, 0
    %p269 = por %p267, %p268
    %s270 = ssub.s32 %s21, %s28
    %p271 = scmp.eq.s32.totalorder %s270, 0
    %s273 = sadd.s32 %s272, 1
    %s274 = scalar_select %p271, %s272, %s273
    %p277 = pneg %p271
    %p278 = scmp.eq.s32.totalorder %s21, 3
    %p279 = por %p277, %p278
    %p280 = scmp.ne.s32.totalorder %s272, %s275
    %p281 = scmp.eq.s32.totalorder %s21, 0
    %p282 = por %p280, %p281
    %p283 = scmp.ne.s32.totalorder %s272, %s275
    %p284 = scmp.eq.s32.totalorder %s26, 3
    %p285 = por %p283, %p284
    %p286 = scmp.ne.s32.totalorder %s275, %s276
    %p287 = scmp.eq.s32.totalorder %s26, 0
    %p288 = por %p286, %p287
    %p289 = scmp.ne.s32.totalorder %s275, %s276
    %p290 = scmp.eq.s32.totalorder %s27, 3
    %p291 = por %p289, %p290
    %p293 = scmp.ne.s32.totalorder %s276, %s292
    %p294 = scmp.eq.s32.totalorder %s27, 0
    %p295 = por %p293, %p294
    %s296 = ssub.s32 %s21, %s28
    %p297 = scmp.eq.s32.totalorder %s296, 0
    %s299 = sadd.s32 %s298, 1
    %s300 = scalar_select %p297, %s298, %s299
    %p303 = pneg %p297
    %p304 = scmp.eq.s32.totalorder %s21, 3
    %p305 = por %p303, %p304
    %p306 = scmp.ne.s32.totalorder %s298, %s301
    %p307 = scmp.eq.s32.totalorder %s21, 0
    %p308 = por %p306, %p307
    %p309 = scmp.ne.s32.totalorder %s298, %s301
    %p310 = scmp.eq.s32.totalorder %s26, 3
    %p311 = por %p309, %p310
    %p312 = scmp.ne.s32.totalorder %s301, %s302
    %p313 = scmp.eq.s32.totalorder %s26, 0
    %p314 = por %p312, %p313
    %p315 = scmp.ne.s32.totalorder %s301, %s302
    %p316 = scmp.eq.s32.totalorder %s27, 3
    %p317 = por %p315, %p316
    %p319 = scmp.ne.s32.totalorder %s302, %s318
    %p320 = scmp.eq.s32.totalorder %s27, 0
    %p321 = por %p319, %p320
    %p322 = scmp.le.s32.totalorder 1, %s21
    %p323 = scmp.lt.s32.totalorder %s21, 5
    %p324 = pnand %p322, %p323
    %p325 = pneg %p324
    // Predicated region
    $region9: #{tpu_custom_call.1} parent=5 // pred_check
      _
    $region10: #{tpu_custom_call.1} parent=5 // pred_check_branch
      %327 = sbr.rel (%p324) target = $region12
    $region11: #{tpu_custom_call.1} parent=5 // pred_region
      %s328 = ssub.s32 %s21, 1
      // Predicated region
      $region13: #{tpu_custom_call.1} parent=11 // pred_check
        %p329 = pneg %p94
      $region14: #{tpu_custom_call.1} parent=11 // pred_check_branch
        %331 = sbr.rel (%p329) target = $region16
      $region15: #{tpu_custom_call.1} parent=11 // pred_region
        _
      $region16: #{tpu_custom_call.1} parent=11 // pred_fallthru
        _
      // Predicated region
      $region17: #{tpu_custom_call.1} parent=11 // pred_check
        %p332 = pneg %p115
      $region18: #{tpu_custom_call.1} parent=11 // pred_check_branch
        %334 = sbr.rel (%p332) target = $region20
      $region19: #{tpu_custom_call.1} parent=11 // pred_region
        _
      $region20: #{tpu_custom_call.1} parent=11 // pred_fallthru
        _
      // Predicated region
      $region21: #{tpu_custom_call.1} parent=11 // pred_check
        %p335 = pneg %p136
      $region22: #{tpu_custom_call.1} parent=11 // pred_check_branch
        %337 = sbr.rel (%p335) target = $region24
      $region23: #{tpu_custom_call.1} parent=11 // pred_region
        _
      $region24: #{tpu_custom_call.1} parent=11 // pred_fallthru
        _
      // Predicated region
      $region25: #{tpu_custom_call.1} parent=11 // pred_check
        %p338 = pneg %p157
      $region26: #{tpu_custom_call.1} parent=11 // pred_check_branch
        %340 = sbr.rel (%p338) target = $region28
      $region27: #{tpu_custom_call.1} parent=11 // pred_region
        _
      $region28: #{tpu_custom_call.1} parent=11 // pred_fallthru
        _
      // Predicated region
      $region29: #{tpu_custom_call.1} parent=11 // pred_check
        %p341 = pneg %p178
      $region30: #{tpu_custom_call.1} parent=11 // pred_check_branch
        %343 = sbr.rel (%p341) target = $region32
      $region31: #{tpu_custom_call.1} parent=11 // pred_region
        _
      $region32: #{tpu_custom_call.1} parent=11 // pred_fallthru
        _
      // Predicated region
      $region33: #{tpu_custom_call.1} parent=11 // pred_check
        %p344 = pneg %p199
      $region34: #{tpu_custom_call.1} parent=11 // pred_check_branch
        %346 = sbr.rel (%p344) target = $region36
      $region35: #{tpu_custom_call.1} parent=11 // pred_region
        _
      $region36: #{tpu_custom_call.1} parent=11 // pred_fallthru
        _
      // Predicated region
      $region37: #{tpu_custom_call.1} parent=11 // pred_check
        %p347 = pneg %p220
      $region38: #{tpu_custom_call.1} parent=11 // pred_check_branch
        %349 = sbr.rel (%p347) target = $region40
      $region39: #{tpu_custom_call.1} parent=11 // pred_region
        _
      $region40: #{tpu_custom_call.1} parent=11 // pred_fallthru
        _
      // Predicated region
      $region41: #{tpu_custom_call.1} parent=11 // pred_check
        %p350 = pneg %p241
      $region42: #{tpu_custom_call.1} parent=11 // pred_check_branch
        %352 = sbr.rel (%p350) target = $region44
      $region43: #{tpu_custom_call.1} parent=11 // pred_region
        _
      $region44: #{tpu_custom_call.1} parent=11 // pred_fallthru
        _
      // Predicated region
      $region45: #{tpu_custom_call.1} parent=11 // pred_check
        %p353 = pneg %p262
      $region46: #{tpu_custom_call.1} parent=11 // pred_check_branch
        %355 = sbr.rel (%p353) target = $region48
      $region47: #{tpu_custom_call.1} parent=11 // pred_region
        _
      $region48: #{tpu_custom_call.1} parent=11 // pred_fallthru
        _
    $region12: #{tpu_custom_call.1} parent=5 // pred_fallthru
      _
    %p356 = scmp.lt.s32.totalorder %s21, 4
    // Predicated region
    $region49: #{tpu_custom_call.1} parent=5 // pred_check
      %p357 = pneg %p356
    $region50: #{tpu_custom_call.1} parent=5 // pred_check_branch
      %359 = sbr.rel (%p357) target = $region52
    $region51: #{tpu_custom_call.1} parent=5 // pred_region
      // Predicated region
      $region53: #{tpu_custom_call.1} parent=51 // pred_check
        %p360 = pneg %p41
      $region54: #{tpu_custom_call.1} parent=51 // pred_check_branch
        %362 = sbr.rel (%p360) target = $region56
      $region55: #{tpu_custom_call.1} parent=51 // pred_region
        %p363 = scmp.lt.s32.totalorder %s21, 3
        %s364 = scalar_select %p363, %s21, 3
        %s365 = smul.addr %s364, 2
        %s366 = smul.addr %s365, 4
        %s367 = scalar_lea.vmem %s0, %s366
      $region56: #{tpu_custom_call.1} parent=51 // pred_fallthru
        _
      // Predicated region
      $region57: #{tpu_custom_call.1} parent=51 // pred_check
        %p368 = pneg %p67
      $region58: #{tpu_custom_call.1} parent=51 // pred_check_branch
        %370 = sbr.rel (%p368) target = $region60
      $region59: #{tpu_custom_call.1} parent=51 // pred_region
        %p371 = scmp.lt.s32.totalorder %s21, 3
        %s372 = scalar_select %p371, %s21, 3
        %s373 = smul.addr %s372, 2
        %s374 = smul.addr %s373, 4
        %s375 = scalar_lea.vmem %s1, %s374
      $region60: #{tpu_custom_call.1} parent=51 // pred_fallthru
        _
    $region52: #{tpu_custom_call.1} parent=5 // pred_fallthru
      _
    %p376 = scmp.le.s32.totalorder 1, %s21
    %p377 = scmp.lt.s32.totalorder %s21, 5
    %p378 = pnand %p376, %p377
    %p379 = pneg %p378
    // Predicated region
    $region61: #{tpu_custom_call.1} parent=5 // pred_check
      _
    $region62: #{tpu_custom_call.1} parent=5 // pred_check_branch
      %381 = sbr.rel (%p378) target = $region64
    $region63: #{tpu_custom_call.1} parent=5 // pred_region
      %s382 = ssub.s32 %s21, 1
      %p383 = scmp.lt.s32.totalorder %s26, 3
      %s384 = scalar_select %p383, %s26, 3
      %s385 = smul.addr %s384, 2
      %s386 = smul.addr %s385, 4
      %s387 = scalar_lea.vmem %s0, %s386
      %p388 = pneg %p47
      %p389 = pneg %p44
      %p390 = scmp.lt.s32.totalorder %s26, 3
      %s391 = scalar_select %p390, %s26, 3
      %s392 = smul.addr %s391, 2
      %s393 = smul.addr %s392, 4
      %s394 = scalar_lea.vmem %s1, %s393
      %p395 = pneg %p73
      %p396 = pneg %p70
      %p397 = pneg %p94
      %p398 = pneg %p91
      %p399 = pneg %p115
      %p400 = pneg %p112
      %p401 = pneg %p136
      %p402 = pneg %p133
      %p403 = pneg %p157
      %p404 = pneg %p154
      %p405 = pneg %p178
      %p406 = pneg %p175
      %p407 = pneg %p199
      %p408 = pneg %p196
      %p409 = pneg %p220
      %p410 = pneg %p217
      %p411 = pneg %p241
      %p412 = pneg %p238
      %p413 = pneg %p262
      %p414 = pneg %p259
      %p415 = pneg %p288
      %p416 = pneg %p285
      %p417 = scmp.lt.s32.totalorder %s26, 3
      %s418 = scalar_select %p417, %s26, 3
      %s419 = smul.addr %s418, 4
      %s420 = scalar_lea.vmem %s11, %s419
      %p421 = pneg %p314
      %p422 = pneg %p311
      %p423 = scmp.lt.s32.totalorder %s26, 3
      %s424 = scalar_select %p423, %s26, 3
      %s425 = smul.addr %s424, 4
      %s426 = scalar_lea.vmem %s12, %s425
      %p427 = scmp.lt.s32.totalorder %s26, 3
      %s428 = scalar_select %p427, %s26, 3
      %s429 = smul.addr %s428, 2
      %s430 = smul.addr %s429, 4
      %s431 = scalar_lea.vmem %s0, %s430
      %p432 = scmp.lt.s32.totalorder %s26, 3
      %s433 = scalar_select %p432, %s26, 3
      %s434 = smul.addr %s433, 2
      %s435 = smul.addr %s434, 4
      %s436 = scalar_lea.vmem %s1, %s435
      %p437 = scmp.lt.s32.totalorder %s26, 3
      %s438 = scalar_select %p437, %s26, 3
      %s439 = smul.addr %s438, 4
      %s440 = scalar_lea.vmem %s11, %s439
      %p441 = scmp.lt.s32.totalorder %s26, 3
      %s442 = scalar_select %p441, %s26, 3
      %s443 = smul.addr %s442, 4
      %s444 = scalar_lea.vmem %s12, %s443
      %v446 = vld [vmem:[%s431] sm:$0xff]
      %v447 = vld [vmem:[%s436] sm:$0xff]
      %v448 = vsub.f32 %v447, %v446
      %v449 = vld [vmem:[%s2] sm:$0xf]
      %v450 = vld [vmem:[%s2 + $0x4] sm:$0xf]
      %v451 = vld [vmem:[%s2 + $0x8] sm:$0xf]
      %v452 = vld [vmem:[%s2 + $0xc] sm:$0xf]
      %v453 = vld [vmem:[%s2 + $0x10] sm:$0xf]
      %v454 = vld [vmem:[%s2 + $0x14] sm:$0xf]
      %v455 = vld [vmem:[%s2 + $0x18] sm:$0xf]
      %v456 = vld [vmem:[%s2 + $0x1c] sm:$0xf]
      %v457 = vld [vmem:[%s3] sm:$0xf]
      %v458 = vld [vmem:[%s3 + $0x4] sm:$0xf]
      %v459 = vld [vmem:[%s3 + $0x8] sm:$0xf]
      %v460 = vld [vmem:[%s3 + $0xc] sm:$0xf]
      %v461 = vld [vmem:[%s3 + $0x10] sm:$0xf]
      %v462 = vld [vmem:[%s3 + $0x14] sm:$0xf]
      %v463 = vld [vmem:[%s3 + $0x18] sm:$0xf]
      %v464 = vld [vmem:[%s3 + $0x1c] sm:$0xf]
      %v465 = vld [vmem:[%s4] sm:$0xff]
      %v466 = vld [vmem:[%s4 + $0x8] sm:$0xff]
      %v467 = vld [vmem:[%s4 + $0x10] sm:$0xff]
      %v468 = vld [vmem:[%s4 + $0x18] sm:$0xff]
      %v469 = vld [vmem:[%s4 + $0x20] sm:$0xff]
      %v470 = vld [vmem:[%s4 + $0x28] sm:$0xff]
      %v471 = vld [vmem:[%s4 + $0x30] sm:$0xff]
      %v472 = vld [vmem:[%s4 + $0x38] sm:$0xff]
      %v474 = vcombine.high %v448, %v448
      %v476 = vpack.c.bf16 %v448, %v448
      %v477 = vpack.c.bf16 %v474, %v474
      %v486 = vunpack.c.l.b16 %v457
      %v487 = vunpack.c.l.b16 %v458
      %v488 = vunpack.c.l.b16 %v459
      %v489 = vunpack.c.l.b16 %v460
      %v490 = vunpack.c.l.b16 %v461
      %v491 = vunpack.c.l.b16 %v462
      %v492 = vunpack.c.l.b16 %v463
      %v493 = vunpack.c.l.b16 %v464
      %v494 = vpack.c.b16 %v487, %v486
      %v495 = vpack.c.b16 %v489, %v488
      %v496 = vpack.c.b16 %v491, %v490
      %v497 = vpack.c.b16 %v493, %v492
      %vm498 = vcmask 31744
      %v500 = vsel %vm498, %v494, 0
      %v503 = vsel %vm498, %v495, 0
      %v506 = vsel %vm498, %v496, 0
      %v509 = vsel %vm498, %v497, 0
      %vm511 = vcmask 1041408
      %v513 = vsel %vm511, %v476, 0
      %v516 = vsel %vm511, %v477, 0
      %518 = vmatprep.subr.bf16.mxu0 %v516
      %519 = vmatpush1.bf16.msra.mxu0 %v513
      %520 = vmatprep.subr.bf16.mxu0 0
      %521 = vmatpush1.bf16.msra.mxu0 0
      %522 = vmatprep.subr.bf16.mxu0 0
      %523 = vmatpush1.bf16.msra.mxu0 0
      %524 = vmatprep.subr.bf16.mxu0 0
      %525 = vmatpush1.bf16.msra.mxu0 0
      %526 = vmatprep.subr.bf16.mxu0 0
      %527 = vmatpush1.bf16.msra.mxu0 0
      %528 = vmatprep.subr.bf16.mxu0 0
      %529 = vmatpush1.bf16.msra.mxu0 0
      %530 = vmatprep.subr.bf16.mxu0 0
      %531 = vmatpush1.bf16.msra.mxu0 0
      %532 = vmatprep.subr.bf16.mxu0 0
      %533 = vmatpush1.bf16.msra.mxu0 0
      %534 = vmatprep.subr.bf16.mxu0 0
      %535 = vmatpush1.bf16.msra.mxu0 0
      %536 = vmatprep.subr.bf16.mxu0 0
      %537 = vmatpush1.bf16.msra.mxu0 0
      %538 = vmatprep.subr.bf16.mxu0 0
      %539 = vmatpush1.bf16.msra.mxu0 0
      %540 = vmatprep.subr.bf16.mxu0 0
      %541 = vmatpush1.bf16.msra.mxu0 0
      %542 = vmatprep.subr.bf16.mxu0 0
      %543 = vmatpush1.bf16.msra.mxu0 0
      %544 = vmatprep.subr.bf16.mxu0 0
      %545 = vmatpush1.bf16.msra.mxu0 0
      %546 = vmatprep.subr.bf16.mxu0 0
      %547 = vmatpush1.bf16.msra.mxu0 0
      %548 = vmatprep.subr.bf16.mxu0 0
      %549 = vmatpush1.bf16.msra.mxu0 0
      %550 = vmatprep.mubr.bf16.mxu0 0
      %551 = vmatmul.mubr.bf16.gmra.mrb[0].mxu0 %v500
      %v552 = vpop.f32.mrb[0].mxu0
      %v553 = vadd.f32 0.0, %v552
      %v554 = vpop.f32.mrb[0].mxu0
      %v555 = vadd.f32 0.0, %v554
      %v556 = vpop.f32.mrb[0].mxu0
      %v557 = vadd.f32 0.0, %v556
      %v558 = vpop.f32.mrb[0].mxu0
      %v559 = vadd.f32 0.0, %v558
      %560 = vmatprep.mubr.bf16.mxu0 0
      %561 = vmatmul.mubr.bf16.gmra.mrb[0].mxu0 %v503
      %v562 = vpop.f32.mrb[0].mxu0
      %v563 = vadd.f32 0.0, %v562
      %v564 = vpop.f32.mrb[0].mxu0
      %v565 = vadd.f32 0.0, %v564
      %v566 = vpop.f32.mrb[0].mxu0
      %v567 = vadd.f32 0.0, %v566
      %v568 = vpop.f32.mrb[0].mxu0
      %v569 = vadd.f32 0.0, %v568
      %570 = vmatprep.mubr.bf16.mxu0 0
      %571 = vmatmul.mubr.bf16.gmra.mrb[0].mxu0 %v506
      %v572 = vpop.f32.mrb[0].mxu0
      %v573 = vadd.f32 0.0, %v572
      %v574 = vpop.f32.mrb[0].mxu0
      %v575 = vadd.f32 0.0, %v574
      %v576 = vpop.f32.mrb[0].mxu0
      %v577 = vadd.f32 0.0, %v576
      %v578 = vpop.f32.mrb[0].mxu0
      %v579 = vadd.f32 0.0, %v578
      %580 = vmatprep.mubr.bf16.mxu0 0
      %581 = vmatmul.mubr.bf16.gmra.mrb[0].mxu0 %v509
      %v582 = vpop.f32.mrb[0].mxu0
      %v583 = vadd.f32 0.0, %v582
      %v584 = vpop.f32.mrb[0].mxu0
      %v585 = vadd.f32 0.0, %v584
      %v586 = vpop.f32.mrb[0].mxu0
      %v587 = vadd.f32 0.0, %v586
      %v588 = vpop.f32.mrb[0].mxu0
      %v589 = vadd.f32 0.0, %v588
      %590 = vdwg.mxu0
      %v592 = vcombine.high %v446, %v446
      %v594 = vpack.c.bf16 %v446, %v446
      %v595 = vpack.c.bf16 %v592, %v592
      %v604 = vunpack.c.l.b16 %v449
      %v605 = vunpack.c.l.b16 %v450
      %v606 = vunpack.c.l.b16 %v451
      %v607 = vunpack.c.l.b16 %v452
      %v608 = vunpack.c.l.b16 %v453
      %v609 = vunpack.c.l.b16 %v454
      %v610 = vunpack.c.l.b16 %v455
      %v611 = vunpack.c.l.b16 %v456
      %v612 = vpack.c.b16 %v605, %v604
      %v613 = vpack.c.b16 %v607, %v606
      %v614 = vpack.c.b16 %v609, %v608
      %v615 = vpack.c.b16 %v611, %v610
      %v617 = vsel %vm498, %v612, 0
      %v620 = vsel %vm498, %v613, 0
      %v623 = vsel %vm498, %v614, 0
      %v626 = vsel %vm498, %v615, 0
      %v629 = vsel %vm511, %v594, 0
      %v632 = vsel %vm511, %v595, 0
      %634 = vmatprep.subr.bf16.mxu0 %v632
      %635 = vmatpush1.bf16.msra.mxu0 %v629
      %636 = vmatprep.subr.bf16.mxu0 0
      %637 = vmatpush1.bf16.msra.mxu0 0
      %638 = vmatprep.subr.bf16.mxu0 0
      %639 = vmatpush1.bf16.msra.mxu0 0
      %640 = vmatprep.subr.bf16.mxu0 0
      %641 = vmatpush1.bf16.msra.mxu0 0
      %642 = vmatprep.subr.bf16.mxu0 0
      %643 = vmatpush1.bf16.msra.mxu0 0
      %644 = vmatprep.subr.bf16.mxu0 0
      %645 = vmatpush1.bf16.msra.mxu0 0
      %646 = vmatprep.subr.bf16.mxu0 0
      %647 = vmatpush1.bf16.msra.mxu0 0
      %648 = vmatprep.subr.bf16.mxu0 0
      %649 = vmatpush1.bf16.msra.mxu0 0
      %650 = vmatprep.subr.bf16.mxu0 0
      %651 = vmatpush1.bf16.msra.mxu0 0
      %652 = vmatprep.subr.bf16.mxu0 0
      %653 = vmatpush1.bf16.msra.mxu0 0
      %654 = vmatprep.subr.bf16.mxu0 0
      %655 = vmatpush1.bf16.msra.mxu0 0
      %656 = vmatprep.subr.bf16.mxu0 0
      %657 = vmatpush1.bf16.msra.mxu0 0
      %658 = vmatprep.subr.bf16.mxu0 0
      %659 = vmatpush1.bf16.msra.mxu0 0
      %660 = vmatprep.subr.bf16.mxu0 0
      %661 = vmatpush1.bf16.msra.mxu0 0
      %662 = vmatprep.subr.bf16.mxu0 0
      %663 = vmatpush1.bf16.msra.mxu0 0
      %664 = vmatprep.subr.bf16.mxu0 0
      %665 = vmatpush1.bf16.msra.mxu0 0
      %666 = vmatprep.mubr.bf16.mxu0 0
      %667 = vmatmul.mubr.bf16.gmra.mrb[0].mxu0 %v617
      %v668 = vpop.f32.mrb[0].mxu0
      %v669 = vadd.f32 %v553, %v668
      %v670 = vpop.f32.mrb[0].mxu0
      %v671 = vadd.f32 %v555, %v670
      %v672 = vpop.f32.mrb[0].mxu0
      %v673 = vadd.f32 %v557, %v672
      %v674 = vpop.f32.mrb[0].mxu0
      %v675 = vadd.f32 %v559, %v674
      %676 = vmatprep.mubr.bf16.mxu0 0
      %677 = vmatmul.mubr.bf16.gmra.mrb[0].mxu0 %v620
      %v678 = vpop.f32.mrb[0].mxu0
      %v679 = vadd.f32 %v563, %v678
      %v680 = vpop.f32.mrb[0].mxu0
      %v681 = vadd.f32 %v565, %v680
      %v682 = vpop.f32.mrb[0].mxu0
      %v683 = vadd.f32 %v567, %v682
      %v684 = vpop.f32.mrb[0].mxu0
      %v685 = vadd.f32 %v569, %v684
      %686 = vmatprep.mubr.bf16.mxu0 0
      %687 = vmatmul.mubr.bf16.gmra.mrb[0].mxu0 %v623
      %v688 = vpop.f32.mrb[0].mxu0
      %v689 = vadd.f32 %v573, %v688
      %v690 = vpop.f32.mrb[0].mxu0
      %v691 = vadd.f32 %v575, %v690
      %v692 = vpop.f32.mrb[0].mxu0
      %v693 = vadd.f32 %v577, %v692
      %v694 = vpop.f32.mrb[0].mxu0
      %v695 = vadd.f32 %v579, %v694
      %696 = vmatprep.mubr.bf16.mxu0 0
      %697 = vmatmul.mubr.bf16.gmra.mrb[0].mxu0 %v626
      %v698 = vpop.f32.mrb[0].mxu0
      %v699 = vadd.f32 %v583, %v698
      %v700 = vpop.f32.mrb[0].mxu0
      %v701 = vadd.f32 %v585, %v700
      %v702 = vpop.f32.mrb[0].mxu0
      %v703 = vadd.f32 %v587, %v702
      %v704 = vpop.f32.mrb[0].mxu0
      %v705 = vadd.f32 %v589, %v704
      %706 = vdwg.mxu0
      %708 = vset.pattern.permute.xlu0 0
      %709 = vperm.xlu0 %708, %v465
      %v710 = vpop.permute.xlu0 %709
      %713 = vset.pattern.permute.xlu0 0
      %714 = vperm.xlu0 %713, %v466
      %v715 = vpop.permute.xlu0 %714
      %718 = vset.pattern.permute.xlu0 0
      %719 = vperm.xlu0 %718, %v467
      %v720 = vpop.permute.xlu0 %719
      %723 = vset.pattern.permute.xlu0 0
      %724 = vperm.xlu0 %723, %v468
      %v725 = vpop.permute.xlu0 %724
      %728 = vset.pattern.permute.xlu0 0
      %729 = vperm.xlu0 %728, %v469
      %v730 = vpop.permute.xlu0 %729
      %733 = vset.pattern.permute.xlu0 0
      %734 = vperm.xlu0 %733, %v470
      %v735 = vpop.permute.xlu0 %734
      %738 = vset.pattern.permute.xlu0 0
      %739 = vperm.xlu0 %738, %v471
      %v740 = vpop.permute.xlu0 %739
      %743 = vset.pattern.permute.xlu0 0
      %744 = vperm.xlu0 %743, %v472
      %v745 = vpop.permute.xlu0 %744
      %v747 = vadd.f32 %v669, %v710
      %v748 = vadd.f32 %v671, %v710
      %v749 = vadd.f32 %v673, %v715
      %v750 = vadd.f32 %v675, %v715
      %v751 = vadd.f32 %v679, %v720
      %v752 = vadd.f32 %v681, %v720
      %v753 = vadd.f32 %v683, %v725
      %v754 = vadd.f32 %v685, %v725
      %v755 = vadd.f32 %v689, %v730
      %v756 = vadd.f32 %v691, %v730
      %v757 = vadd.f32 %v693, %v735
      %v758 = vadd.f32 %v695, %v735
      %v759 = vadd.f32 %v699, %v740
      %v760 = vadd.f32 %v701, %v740
      %v761 = vadd.f32 %v703, %v745
      %v762 = vadd.f32 %v705, %v745
      %v764 = vcombine.high %v447, %v447
      %v766 = vpack.c.bf16 %v447, %v447
      %v767 = vpack.c.bf16 %v764, %v764
      %v769 = vsel %vm511, %v766, 0
      %v772 = vsel %vm511, %v767, 0
      %774 = vmatprep.subr.bf16.mxu0 %v772
      %775 = vmatpush1.bf16.msra.mxu0 %v769
      %776 = vmatprep.subr.bf16.mxu0 0
      %777 = vmatpush1.bf16.msra.mxu0 0
      %778 = vmatprep.subr.bf16.mxu0 0
      %779 = vmatpush1.bf16.msra.mxu0 0
      %780 = vmatprep.subr.bf16.mxu0 0
      %781 = vmatpush1.bf16.msra.mxu0 0
      %782 = vmatprep.subr.bf16.mxu0 0
      %783 = vmatpush1.bf16.msra.mxu0 0
      %784 = vmatprep.subr.bf16.mxu0 0
      %785 = vmatpush1.bf16.msra.mxu0 0
      %786 = vmatprep.subr.bf16.mxu0 0
      %787 = vmatpush1.bf16.msra.mxu0 0
      %788 = vmatprep.subr.bf16.mxu0 0
      %789 = vmatpush1.bf16.msra.mxu0 0
      %790 = vmatprep.subr.bf16.mxu0 0
      %791 = vmatpush1.bf16.msra.mxu0 0
      %792 = vmatprep.subr.bf16.mxu0 0
      %793 = vmatpush1.bf16.msra.mxu0 0
      %794 = vmatprep.subr.bf16.mxu0 0
      %795 = vmatpush1.bf16.msra.mxu0 0
      %796 = vmatprep.subr.bf16.mxu0 0
      %797 = vmatpush1.bf16.msra.mxu0 0
      %798 = vmatprep.subr.bf16.mxu0 0
      %799 = vmatpush1.bf16.msra.mxu0 0
      %800 = vmatprep.subr.bf16.mxu0 0
      %801 = vmatpush1.bf16.msra.mxu0 0
      %802 = vmatprep.subr.bf16.mxu0 0
      %803 = vmatpush1.bf16.msra.mxu0 0
      %804 = vmatprep.subr.bf16.mxu0 0
      %805 = vmatpush1.bf16.msra.mxu0 0
      %806 = vmatprep.mubr.bf16.mxu0 0
      %807 = vmatmul.mubr.bf16.gmra.mrb[0].mxu0 %v617
      %v808 = vpop.f32.mrb[0].mxu0
      %v809 = vadd.f32 %v553, %v808
      %v810 = vpop.f32.mrb[0].mxu0
      %v811 = vadd.f32 %v555, %v810
      %v812 = vpop.f32.mrb[0].mxu0
      %v813 = vadd.f32 %v557, %v812
      %v814 = vpop.f32.mrb[0].mxu0
      %v815 = vadd.f32 %v559, %v814
      %816 = vmatprep.mubr.bf16.mxu0 0
      %817 = vmatmul.mubr.bf16.gmra.mrb[0].mxu0 %v620
      %v818 = vpop.f32.mrb[0].mxu0
      %v819 = vadd.f32 %v563, %v818
      %v820 = vpop.f32.mrb[0].mxu0
      %v821 = vadd.f32 %v565, %v820
      %v822 = vpop.f32.mrb[0].mxu0
      %v823 = vadd.f32 %v567, %v822
      %v824 = vpop.f32.mrb[0].mxu0
      %v825 = vadd.f32 %v569, %v824
      %826 = vmatprep.mubr.bf16.mxu0 0
      %827 = vmatmul.mubr.bf16.gmra.mrb[0].mxu0 %v623
      %v828 = vpop.f32.mrb[0].mxu0
      %v829 = vadd.f32 %v573, %v828
      %v830 = vpop.f32.mrb[0].mxu0
      %v831 = vadd.f32 %v575, %v830
      %v832 = vpop.f32.mrb[0].mxu0
      %v833 = vadd.f32 %v577, %v832
      %v834 = vpop.f32.mrb[0].mxu0
      %v835 = vadd.f32 %v579, %v834
      %836 = vmatprep.mubr.bf16.mxu0 0
      %837 = vmatmul.mubr.bf16.gmra.mrb[0].mxu0 %v626
      %v838 = vpop.f32.mrb[0].mxu0
      %v839 = vadd.f32 %v583, %v838
      %v840 = vpop.f32.mrb[0].mxu0
      %v841 = vadd.f32 %v585, %v840
      %v842 = vpop.f32.mrb[0].mxu0
      %v843 = vadd.f32 %v587, %v842
      %v844 = vpop.f32.mrb[0].mxu0
      %v845 = vadd.f32 %v589, %v844
      %846 = vdwg.mxu0
      %v847 = vadd.f32 %v809, %v710
      %v848 = vadd.f32 %v811, %v710
      %v849 = vadd.f32 %v813, %v715
      %v850 = vadd.f32 %v815, %v715
      %v851 = vadd.f32 %v819, %v720
      %v852 = vadd.f32 %v821, %v720
      %v853 = vadd.f32 %v823, %v725
      %v854 = vadd.f32 %v825, %v725
      %v855 = vadd.f32 %v829, %v730
      %v856 = vadd.f32 %v831, %v730
      %v857 = vadd.f32 %v833, %v735
      %v858 = vadd.f32 %v835, %v735
      %v859 = vadd.f32 %v839, %v740
      %v860 = vadd.f32 %v841, %v740
      %v861 = vadd.f32 %v843, %v745
      %v862 = vadd.f32 %v845, %v745
      %v863 = vld [vmem:[%s7] sm:$0xff]
      %v864 = vld [vmem:[%s7 + $0x8] sm:$0xff]
      %v865 = vld [vmem:[%s7 + $0x10] sm:$0xff]
      %v866 = vld [vmem:[%s7 + $0x18] sm:$0xff]
      %v867 = vld [vmem:[%s7 + $0x20] sm:$0xff]
      %v868 = vld [vmem:[%s7 + $0x28] sm:$0xff]
      %v869 = vld [vmem:[%s7 + $0x30] sm:$0xff]
      %v870 = vld [vmem:[%s7 + $0x38] sm:$0xff]
      %v871 = vld [vmem:[%s8] sm:$0xff]
      %v872 = vld [vmem:[%s8 + $0x8] sm:$0xff]
      %v873 = vld [vmem:[%s8 + $0x10] sm:$0xff]
      %v874 = vld [vmem:[%s8 + $0x18] sm:$0xff]
      %v875 = vld [vmem:[%s5] sm:$0xff]
      %v876 = vld [vmem:[%s5 + $0x8] sm:$0xff]
      %v877 = vld [vmem:[%s5 + $0x10] sm:$0xff]
      %v878 = vld [vmem:[%s5 + $0x18] sm:$0xff]
      %v879 = vld [vmem:[%s5 + $0x20] sm:$0xff]
      %v880 = vld [vmem:[%s5 + $0x28] sm:$0xff]
      %v881 = vld [vmem:[%s5 + $0x30] sm:$0xff]
      %v882 = vld [vmem:[%s5 + $0x38] sm:$0xff]
      %v883 = vld [vmem:[%s6] sm:$0xff]
      %v884 = vld [vmem:[%s6 + $0x8] sm:$0xff]
      %v885 = vld [vmem:[%s6 + $0x10] sm:$0xff]
      %v886 = vld [vmem:[%s6 + $0x18] sm:$0xff]
      %v887 = vld [vmem:[%s6 + $0x20] sm:$0xff]
      %v888 = vld [vmem:[%s6 + $0x28] sm:$0xff]
      %v889 = vld [vmem:[%s6 + $0x30] sm:$0xff]
      %v890 = vld [vmem:[%s6 + $0x38] sm:$0xff]
      %v891 = vadd.f32 %v747, %v748
      %892 = vadd.xlane.f32.xlu0 %v891
      %v893 = vpop.xlane.xlu0 %892
      %v894 = vadd.f32 %v749, %v750
      %895 = vadd.xlane.f32.xlu0 %v894
      %v896 = vpop.xlane.xlu0 %895
      %v897 = vadd.f32 %v751, %v752
      %898 = vadd.xlane.f32.xlu0 %v897
      %v899 = vpop.xlane.xlu0 %898
      %v900 = vadd.f32 %v753, %v754
      %901 = vadd.xlane.f32.xlu0 %v900
      %v902 = vpop.xlane.xlu0 %901
      %v903 = vadd.f32 %v755, %v756
      %904 = vadd.xlane.f32.xlu0 %v903
      %v905 = vpop.xlane.xlu0 %904
      %v906 = vadd.f32 %v757, %v758
      %907 = vadd.xlane.f32.xlu0 %v906
      %v908 = vpop.xlane.xlu0 %907
      %v909 = vadd.f32 %v759, %v760
      %910 = vadd.xlane.f32.xlu0 %v909
      %v911 = vpop.xlane.xlu0 %910
      %v912 = vadd.f32 %v761, %v762
      %913 = vadd.xlane.f32.xlu0 %v912
      %v914 = vpop.xlane.xlu0 %913
      %v915 = vmul.f32 %v747, %v747
      %v916 = vmul.f32 %v748, %v748
      %v917 = vmul.f32 %v749, %v749
      %v918 = vmul.f32 %v750, %v750
      %v919 = vmul.f32 %v751, %v751
      %v920 = vmul.f32 %v752, %v752
      %v921 = vmul.f32 %v753, %v753
      %v922 = vmul.f32 %v754, %v754
      %v923 = vmul.f32 %v755, %v755
      %v924 = vmul.f32 %v756, %v756
      %v925 = vmul.f32 %v757, %v757
      %v926 = vmul.f32 %v758, %v758
      %v927 = vmul.f32 %v759, %v759
      %v928 = vmul.f32 %v760, %v760
      %v929 = vmul.f32 %v761, %v761
      %v930 = vmul.f32 %v762, %v762
      %v931 = vadd.f32 %v915, %v916
      %932 = vadd.xlane.f32.xlu0 %v931
      %v933 = vpop.xlane.xlu0 %932
      %v934 = vadd.f32 %v917, %v918
      %935 = vadd.xlane.f32.xlu0 %v934
      %v936 = vpop.xlane.xlu0 %935
      %v937 = vadd.f32 %v919, %v920
      %938 = vadd.xlane.f32.xlu0 %v937
      %v939 = vpop.xlane.xlu0 %938
      %v940 = vadd.f32 %v921, %v922
      %941 = vadd.xlane.f32.xlu0 %v940
      %v942 = vpop.xlane.xlu0 %941
      %v943 = vadd.f32 %v923, %v924
      %944 = vadd.xlane.f32.xlu0 %v943
      %v945 = vpop.xlane.xlu0 %944
      %v946 = vadd.f32 %v925, %v926
      %947 = vadd.xlane.f32.xlu0 %v946
      %v948 = vpop.xlane.xlu0 %947
      %v949 = vadd.f32 %v927, %v928
      %950 = vadd.xlane.f32.xlu0 %v949
      %v951 = vpop.xlane.xlu0 %950
      %v952 = vadd.f32 %v929, %v930
      %953 = vadd.xlane.f32.xlu0 %v952
      %v954 = vpop.xlane.xlu0 %953
      %vm955 = vcmask 523264
      %v957 = vsel %vm955, %v871, 0
      %v960 = vsel %vm955, %v872, 0
      %v963 = vsel %vm955, %v873, 0
      %v966 = vsel %vm955, %v874, 0
      %968 = vmatprep.subr.mxu0 0.0
      %969 = vmatpush1.msra.mxu0 %v893
      %970 = vmatprep.subr.mxu0 0.0
      %971 = vmatpush1.msra.mxu0 %v896
      %972 = vmatprep.subr.mxu0 0.0
      %973 = vmatpush1.msra.mxu0 %v899
      %974 = vmatprep.subr.mxu0 0.0
      %975 = vmatpush1.msra.mxu0 %v902
      %976 = vmatprep.subr.mxu0 0.0
      %977 = vmatpush1.msra.mxu0 %v905
      %978 = vmatprep.subr.mxu0 0.0
      %979 = vmatpush1.msra.mxu0 %v908
      %980 = vmatprep.subr.mxu0 0.0
      %981 = vmatpush1.msra.mxu0 %v911
      %982 = vmatprep.subr.mxu0 0.0
      %983 = vmatpush1.msra.mxu0 %v914
      %984 = vmatprep.subr.mxu0 0.0
      %985 = vmatpush1.msra.mxu0 0.0
      %986 = vmatprep.subr.mxu0 0.0
      %987 = vmatpush1.msra.mxu0 0.0
      %988 = vmatprep.subr.mxu0 0.0
      %989 = vmatpush1.msra.mxu0 0.0
      %990 = vmatprep.subr.mxu0 0.0
      %991 = vmatpush1.msra.mxu0 0.0
      %992 = vmatprep.subr.mxu0 0.0
      %993 = vmatpush1.msra.mxu0 0.0
      %994 = vmatprep.subr.mxu0 0.0
      %995 = vmatpush1.msra.mxu0 0.0
      %996 = vmatprep.subr.mxu0 0.0
      %997 = vmatpush1.msra.mxu0 0.0
      %998 = vmatprep.subr.mxu0 0.0
      %999 = vmatpush1.msra.mxu0 0.0
      %1000 = vmatprep.subr.mxu0 0.0
      %1001 = vmatpush1.msra.mxu0 0.0
      %1002 = vmatprep.subr.mxu0 0.0
      %1003 = vmatpush1.msra.mxu0 0.0
      %1004 = vmatprep.subr.mxu0 0.0
      %1005 = vmatpush1.msra.mxu0 0.0
      %1006 = vmatprep.subr.mxu0 0.0
      %1007 = vmatpush1.msra.mxu0 0.0
      %1008 = vmatprep.subr.mxu0 0.0
      %1009 = vmatpush1.msra.mxu0 0.0
      %1010 = vmatprep.subr.mxu0 0.0
      %1011 = vmatpush1.msra.mxu0 0.0
      %1012 = vmatprep.subr.mxu0 0.0
      %1013 = vmatpush1.msra.mxu0 0.0
      %1014 = vmatprep.subr.mxu0 0.0
      %1015 = vmatpush1.msra.mxu0 0.0
      %1016 = vmatprep.subr.mxu0 0.0
      %1017 = vmatpush1.msra.mxu0 0.0
      %1018 = vmatprep.subr.mxu0 0.0
      %1019 = vmatpush1.msra.mxu0 0.0
      %1020 = vmatprep.subr.mxu0 0.0
      %1021 = vmatpush1.msra.mxu0 0.0
      %1022 = vmatprep.subr.mxu0 0.0
      %1023 = vmatpush1.msra.mxu0 0.0
      %1024 = vmatprep.subr.mxu0 0.0
      %1025 = vmatpush1.msra.mxu0 0.0
      %1026 = vmatprep.subr.mxu0 0.0
      %1027 = vmatpush1.msra.mxu0 0.0
      %1028 = vmatprep.subr.mxu0 0.0
      %1029 = vmatpush1.msra.mxu0 0.0
      %1030 = vmatprep.subr.mxu0 0.0
      %1031 = vmatpush1.msra.mxu0 0.0
      %1032 = vmatprep.mubr.f32.mxu0 0.0
      %1033 = vmatmul.mubr.f32.gmra.mrb[0].mxu0 %v957
      %v1034 = vpop.f32.mrb[0].mxu0
      %v1035 = vadd.f32 0.0, %v1034
      %v1036 = vpop.f32.mrb[0].mxu0
      %1037 = vmatprep.mubr.f32.mxu0 0.0
      %1038 = vmatmul.mubr.f32.gmra.mrb[0].mxu0 %v960
      %v1039 = vpop.f32.mrb[0].mxu0
      %v1040 = vadd.f32 0.0, %v1039
      %v1041 = vpop.f32.mrb[0].mxu0
      %1042 = vmatprep.mubr.f32.mxu0 0.0
      %1043 = vmatmul.mubr.f32.gmra.mrb[0].mxu0 %v963
      %v1044 = vpop.f32.mrb[0].mxu0
      %v1045 = vadd.f32 0.0, %v1044
      %v1046 = vpop.f32.mrb[0].mxu0
      %1047 = vmatprep.mubr.f32.mxu0 0.0
      %1048 = vmatmul.mubr.f32.gmra.mrb[0].mxu0 %v966
      %v1049 = vpop.f32.mrb[0].mxu0
      %v1050 = vadd.f32 0.0, %v1049
      %v1051 = vpop.f32.mrb[0].mxu0
      %1052 = vdwg.mxu0
      %v1053 = vmul.f32 %v1035, 0.001953125
      %v1054 = vmul.f32 %v1040, 0.001953125
      %v1055 = vmul.f32 %v1045, 0.001953125
      %v1056 = vmul.f32 %v1050, 0.001953125
      %1057 = vmatprep.subr.mxu0 0.0
      %1058 = vmatpush1.msra.mxu0 %v933
      %1059 = vmatprep.subr.mxu0 0.0
      %1060 = vmatpush1.msra.mxu0 %v936
      %1061 = vmatprep.subr.mxu0 0.0
      %1062 = vmatpush1.msra.mxu0 %v939
      %1063 = vmatprep.subr.mxu0 0.0
      %1064 = vmatpush1.msra.mxu0 %v942
      %1065 = vmatprep.subr.mxu0 0.0
      %1066 = vmatpush1.msra.mxu0 %v945
      %1067 = vmatprep.subr.mxu0 0.0
      %1068 = vmatpush1.msra.mxu0 %v948
      %1069 = vmatprep.subr.mxu0 0.0
      %1070 = vmatpush1.msra.mxu0 %v951
      %1071 = vmatprep.subr.mxu0 0.0
      %1072 = vmatpush1.msra.mxu0 %v954
      %1073 = vmatprep.subr.mxu0 0.0
      %1074 = vmatpush1.msra.mxu0 0.0
      %1075 = vmatprep.subr.mxu0 0.0
      %1076 = vmatpush1.msra.mxu0 0.0
      %1077 = vmatprep.subr.mxu0 0.0
      %1078 = vmatpush1.msra.mxu0 0.0
      %1079 = vmatprep.subr.mxu0 0.0
      %1080 = vmatpush1.msra.mxu0 0.0
      %1081 = vmatprep.subr.mxu0 0.0
      %1082 = vmatpush1.msra.mxu0 0.0
      %1083 = vmatprep.subr.mxu0 0.0
      %1084 = vmatpush1.msra.mxu0 0.0
      %1085 = vmatprep.subr.mxu0 0.0
      %1086 = vmatpush1.msra.mxu0 0.0
      %1087 = vmatprep.subr.mxu0 0.0
      %1088 = vmatpush1.msra.mxu0 0.0
      %1089 = vmatprep.subr.mxu0 0.0
      %1090 = vmatpush1.msra.mxu0 0.0
      %1091 = vmatprep.subr.mxu0 0.0
      %1092 = vmatpush1.msra.mxu0 0.0
      %1093 = vmatprep.subr.mxu0 0.0
      %1094 = vmatpush1.msra.mxu0 0.0
      %1095 = vmatprep.subr.mxu0 0.0
      %1096 = vmatpush1.msra.mxu0 0.0
      %1097 = vmatprep.subr.mxu0 0.0
      %1098 = vmatpush1.msra.mxu0 0.0
      %1099 = vmatprep.subr.mxu0 0.0
      %1100 = vmatpush1.msra.mxu0 0.0
      %1101 = vmatprep.subr.mxu0 0.0
      %1102 = vmatpush1.msra.mxu0 0.0
      %1103 = vmatprep.subr.mxu0 0.0
      %1104 = vmatpush1.msra.mxu0 0.0
      %1105 = vmatprep.subr.mxu0 0.0
      %1106 = vmatpush1.msra.mxu0 0.0
      %1107 = vmatprep.subr.mxu0 0.0
      %1108 = vmatpush1.msra.mxu0 0.0
      %1109 = vmatprep.subr.mxu0 0.0
      %1110 = vmatpush1.msra.mxu0 0.0
      %1111 = vmatprep.subr.mxu0 0.0
      %1112 = vmatpush1.msra.mxu0 0.0
      %1113 = vmatprep.subr.mxu0 0.0
      %1114 = vmatpush1.msra.mxu0 0.0
      %1115 = vmatprep.subr.mxu0 0.0
      %1116 = vmatpush1.msra.mxu0 0.0
      %1117 = vmatprep.subr.mxu0 0.0
      %1118 = vmatpush1.msra.mxu0 0.0
      %1119 = vmatprep.subr.mxu0 0.0
      %1120 = vmatpush1.msra.mxu0 0.0
      %1121 = vmatprep.mubr.f32.mxu0 0.0
      %1122 = vmatmul.mubr.f32.gmra.mrb[0].mxu0 %v957
      %v1123 = vpop.f32.mrb[0].mxu0
      %v1124 = vadd.f32 0.0, %v1123
      %v1125 = vpop.f32.mrb[0].mxu0
      %1126 = vmatprep.mubr.f32.mxu0 0.0
      %1127 = vmatmul.mubr.f32.gmra.mrb[0].mxu0 %v960
      %v1128 = vpop.f32.mrb[0].mxu0
      %v1129 = vadd.f32 0.0, %v1128
      %v1130 = vpop.f32.mrb[0].mxu0
      %1131 = vmatprep.mubr.f32.mxu0 0.0
      %1132 = vmatmul.mubr.f32.gmra.mrb[0].mxu0 %v963
      %v1133 = vpop.f32.mrb[0].mxu0
      %v1134 = vadd.f32 0.0, %v1133
      %v1135 = vpop.f32.mrb[0].mxu0
      %1136 = vmatprep.mubr.f32.mxu0 0.0
      %1137 = vmatmul.mubr.f32.gmra.mrb[0].mxu0 %v966
      %v1138 = vpop.f32.mrb[0].mxu0
      %v1139 = vadd.f32 0.0, %v1138
      %v1140 = vpop.f32.mrb[0].mxu0
      %1141 = vdwg.mxu0
      %v1142 = vmul.f32 %v1124, 0.001953125
      %v1143 = vmul.f32 %v1129, 0.001953125
      %v1144 = vmul.f32 %v1134, 0.001953125
      %v1145 = vmul.f32 %v1139, 0.001953125
      %v1146 = vmul.f32 %v1053, %v1053
      %v1147 = vmul.f32 %v1054, %v1054
      %v1148 = vmul.f32 %v1055, %v1055
      %v1149 = vmul.f32 %v1056, %v1056
      %v1150 = vsub.f32 %v1142, %v1146
      %v1151 = vsub.f32 %v1143, %v1147
      %v1152 = vsub.f32 %v1144, %v1148
      %v1153 = vsub.f32 %v1145, %v1149
      %v1154 = vadd.f32 %v1150, 1e-05
      %v1155 = vadd.f32 %v1151, 1e-05
      %v1156 = vadd.f32 %v1152, 1e-05
      %v1157 = vadd.f32 %v1153, 1e-05
      %v1158 = vrsqrt.pop %v1154
      %v1159 = vrsqrt.pop %v1155
      %v1160 = vrsqrt.pop %v1156
      %v1161 = vrsqrt.pop %v1157
      %vm1162 = vcmask 261120
      %v1164 = vsel %vm1162, %v863, 0
      %v1167 = vsel %vm1162, %v864, 0
      %v1170 = vsel %vm1162, %v865, 0
      %v1173 = vsel %vm1162, %v866, 0
      %v1176 = vsel %vm1162, %v867, 0
      %v1179 = vsel %vm1162, %v868, 0
      %v1182 = vsel %vm1162, %v869, 0
      %v1185 = vsel %vm1162, %v870, 0
      %1187 = vmatprep.subr.mxu0 0.0
      %1188 = vmatpush1.msra.mxu0 %v1053
      %1189 = vmatprep.subr.mxu0 0.0
      %1190 = vmatpush1.msra.mxu0 %v1054
      %1191 = vmatprep.subr.mxu0 0.0
      %1192 = vmatpush1.msra.mxu0 %v1055
      %1193 = vmatprep.subr.mxu0 0.0
      %1194 = vmatpush1.msra.mxu0 %v1056
      %1195 = vmatprep.subr.mxu0 0.0
      %1196 = vmatpush1.msra.mxu0 0.0
      %1197 = vmatprep.subr.mxu0 0.0
      %1198 = vmatpush1.msra.mxu0 0.0
      %1199 = vmatprep.subr.mxu0 0.0
      %1200 = vmatpush1.msra.mxu0 0.0
      %1201 = vmatprep.subr.mxu0 0.0
      %1202 = vmatpush1.msra.mxu0 0.0
      %1203 = vmatprep.subr.mxu0 0.0
      %1204 = vmatpush1.msra.mxu0 0.0
      %1205 = vmatprep.subr.mxu0 0.0
      %1206 = vmatpush1.msra.mxu0 0.0
      %1207 = vmatprep.subr.mxu0 0.0
      %1208 = vmatpush1.msra.mxu0 0.0
      %1209 = vmatprep.subr.mxu0 0.0
      %1210 = vmatpush1.msra.mxu0 0.0
      %1211 = vmatprep.subr.mxu0 0.0
      %1212 = vmatpush1.msra.mxu0 0.0
      %1213 = vmatprep.subr.mxu0 0.0
      %1214 = vmatpush1.msra.mxu0 0.0
      %1215 = vmatprep.subr.mxu0 0.0
      %1216 = vmatpush1.msra.mxu0 0.0
      %1217 = vmatprep.subr.mxu0 0.0
      %1218 = vmatpush1.msra.mxu0 0.0
      %1219 = vmatprep.subr.mxu0 0.0
      %1220 = vmatpush1.msra.mxu0 0.0
      %1221 = vmatprep.subr.mxu0 0.0
      %1222 = vmatpush1.msra.mxu0 0.0
      %1223 = vmatprep.subr.mxu0 0.0
      %1224 = vmatpush1.msra.mxu0 0.0
      %1225 = vmatprep.subr.mxu0 0.0
      %1226 = vmatpush1.msra.mxu0 0.0
      %1227 = vmatprep.subr.mxu0 0.0
      %1228 = vmatpush1.msra.mxu0 0.0
      %1229 = vmatprep.subr.mxu0 0.0
      %1230 = vmatpush1.msra.mxu0 0.0
      %1231 = vmatprep.subr.mxu0 0.0
      %1232 = vmatpush1.msra.mxu0 0.0
      %1233 = vmatprep.subr.mxu0 0.0
      %1234 = vmatpush1.msra.mxu0 0.0
      %1235 = vmatprep.subr.mxu0 0.0
      %1236 = vmatpush1.msra.mxu0 0.0
      %1237 = vmatprep.subr.mxu0 0.0
      %1238 = vmatpush1.msra.mxu0 0.0
      %1239 = vmatprep.subr.mxu0 0.0
      %1240 = vmatpush1.msra.mxu0 0.0
      %1241 = vmatprep.subr.mxu0 0.0
      %1242 = vmatpush1.msra.mxu0 0.0
      %1243 = vmatprep.subr.mxu0 0.0
      %1244 = vmatpush1.msra.mxu0 0.0
      %1245 = vmatprep.subr.mxu0 0.0
      %1246 = vmatpush1.msra.mxu0 0.0
      %1247 = vmatprep.subr.mxu0 0.0
      %1248 = vmatpush1.msra.mxu0 0.0
      %1249 = vmatprep.subr.mxu0 0.0
      %1250 = vmatpush1.msra.mxu0 0.0
      %1251 = vmatprep.mubr.f32.mxu0 0.0
      %1252 = vmatmul.mubr.f32.gmra.mrb[0].mxu0 %v1164
      %v1253 = vpop.f32.mrb[0].mxu0
      %v1254 = vadd.f32 0.0, %v1253
      %v1255 = vpop.f32.mrb[0].mxu0
      %1256 = vmatprep.mubr.f32.mxu0 0.0
      %1257 = vmatmul.mubr.f32.gmra.mrb[0].mxu0 %v1167
      %v1258 = vpop.f32.mrb[0].mxu0
      %v1259 = vadd.f32 0.0, %v1258
      %v1260 = vpop.f32.mrb[0].mxu0
      %1261 = vmatprep.mubr.f32.mxu0 0.0
      %1262 = vmatmul.mubr.f32.gmra.mrb[0].mxu0 %v1170
      %v1263 = vpop.f32.mrb[0].mxu0
      %v1264 = vadd.f32 0.0, %v1263
      %v1265 = vpop.f32.mrb[0].mxu0
      %1266 = vmatprep.mubr.f32.mxu0 0.0
      %1267 = vmatmul.mubr.f32.gmra.mrb[0].mxu0 %v1173
      %v1268 = vpop.f32.mrb[0].mxu0
      %v1269 = vadd.f32 0.0, %v1268
      %v1270 = vpop.f32.mrb[0].mxu0
      %1271 = vmatprep.mubr.f32.mxu0 0.0
      %1272 = vmatmul.mubr.f32.gmra.mrb[0].mxu0 %v1176
      %v1273 = vpop.f32.mrb[0].mxu0
      %v1274 = vadd.f32 0.0, %v1273
      %v1275 = vpop.f32.mrb[0].mxu0
      %1276 = vmatprep.mubr.f32.mxu0 0.0
      %1277 = vmatmul.mubr.f32.gmra.mrb[0].mxu0 %v1179
      %v1278 = vpop.f32.mrb[0].mxu0
      %v1279 = vadd.f32 0.0, %v1278
      %v1280 = vpop.f32.mrb[0].mxu0
      %1281 = vmatprep.mubr.f32.mxu0 0.0
      %1282 = vmatmul.mubr.f32.gmra.mrb[0].mxu0 %v1182
      %v1283 = vpop.f32.mrb[0].mxu0
      %v1284 = vadd.f32 0.0, %v1283
      %v1285 = vpop.f32.mrb[0].mxu0
      %1286 = vmatprep.mubr.f32.mxu0 0.0
      %1287 = vmatmul.mubr.f32.gmra.mrb[0].mxu0 %v1185
      %v1288 = vpop.f32.mrb[0].mxu0
      %v1289 = vadd.f32 0.0, %v1288
      %v1290 = vpop.f32.mrb[0].mxu0
      %1291 = vdwg.mxu0
      %1292 = vmatprep.subr.mxu0 0.0
      %1293 = vmatpush1.msra.mxu0 %v1158
      %1294 = vmatprep.subr.mxu0 0.0
      %1295 = vmatpush1.msra.mxu0 %v1159
      %1296 = vmatprep.subr.mxu0 0.0
      %1297 = vmatpush1.msra.mxu0 %v1160
      %1298 = vmatprep.subr.mxu0 0.0
      %1299 = vmatpush1.msra.mxu0 %v1161
      %1300 = vmatprep.subr.mxu0 0.0
      %1301 = vmatpush1.msra.mxu0 0.0
      %1302 = vmatprep.subr.mxu0 0.0
      %1303 = vmatpush1.msra.mxu0 0.0
      %1304 = vmatprep.subr.mxu0 0.0
      %1305 = vmatpush1.msra.mxu0 0.0
      %1306 = vmatprep.subr.mxu0 0.0
      %1307 = vmatpush1.msra.mxu0 0.0
      %1308 = vmatprep.subr.mxu0 0.0
      %1309 = vmatpush1.msra.mxu0 0.0
      %1310 = vmatprep.subr.mxu0 0.0
      %1311 = vmatpush1.msra.mxu0 0.0
      %1312 = vmatprep.subr.mxu0 0.0
      %1313 = vmatpush1.msra.mxu0 0.0
      %1314 = vmatprep.subr.mxu0 0.0
      %1315 = vmatpush1.msra.mxu0 0.0
      %1316 = vmatprep.subr.mxu0 0.0
      %1317 = vmatpush1.msra.mxu0 0.0
      %1318 = vmatprep.subr.mxu0 0.0
      %1319 = vmatpush1.msra.mxu0 0.0
      %1320 = vmatprep.subr.mxu0 0.0
      %1321 = vmatpush1.msra.mxu0 0.0
      %1322 = vmatprep.subr.mxu0 0.0
      %1323 = vmatpush1.msra.mxu0 0.0
      %1324 = vmatprep.subr.mxu0 0.0
      %1325 = vmatpush1.msra.mxu0 0.0
      %1326 = vmatprep.subr.mxu0 0.0
      %1327 = vmatpush1.msra.mxu0 0.0
      %1328 = vmatprep.subr.mxu0 0.0
      %1329 = vmatpush1.msra.mxu0 0.0
      %1330 = vmatprep.subr.mxu0 0.0
      %1331 = vmatpush1.msra.mxu0 0.0
      %1332 = vmatprep.subr.mxu0 0.0
      %1333 = vmatpush1.msra.mxu0 0.0
      %1334 = vmatprep.subr.mxu0 0.0
      %1335 = vmatpush1.msra.mxu0 0.0
      %1336 = vmatprep.subr.mxu0 0.0
      %1337 = vmatpush1.msra.mxu0 0.0
      %1338 = vmatprep.subr.mxu0 0.0
      %1339 = vmatpush1.msra.mxu0 0.0
      %1340 = vmatprep.subr.mxu0 0.0
      %1341 = vmatpush1.msra.mxu0 0.0
      %1342 = vmatprep.subr.mxu0 0.0
      %1343 = vmatpush1.msra.mxu0 0.0
      %1344 = vmatprep.subr.mxu0 0.0
      %1345 = vmatpush1.msra.mxu0 0.0
      %1346 = vmatprep.subr.mxu0 0.0
      %1347 = vmatpush1.msra.mxu0 0.0
      %1348 = vmatprep.subr.mxu0 0.0
      %1349 = vmatpush1.msra.mxu0 0.0
      %1350 = vmatprep.subr.mxu0 0.0
      %1351 = vmatpush1.msra.mxu0 0.0
      %1352 = vmatprep.subr.mxu0 0.0
      %1353 = vmatpush1.msra.mxu0 0.0
      %1354 = vmatprep.subr.mxu0 0.0
      %1355 = vmatpush1.msra.mxu0 0.0
      %1356 = vmatprep.mubr.f32.mxu0 0.0
      %1357 = vmatmul.mubr.f32.gmra.mrb[0].mxu0 %v1164
      %v1358 = vpop.f32.mrb[0].mxu0
      %v1359 = vadd.f32 0.0, %v1358
      %v1360 = vpop.f32.mrb[0].mxu0
      %1361 = vmatprep.mubr.f32.mxu0 0.0
      %1362 = vmatmul.mubr.f32.gmra.mrb[0].mxu0 %v1167
      %v1363 = vpop.f32.mrb[0].mxu0
      %v1364 = vadd.f32 0.0, %v1363
      %v1365 = vpop.f32.mrb[0].mxu0
      %1366 = vmatprep.mubr.f32.mxu0 0.0
      %1367 = vmatmul.mubr.f32.gmra.mrb[0].mxu0 %v1170
      %v1368 = vpop.f32.mrb[0].mxu0
      %v1369 = vadd.f32 0.0, %v1368
      %v1370 = vpop.f32.mrb[0].mxu0
      %1371 = vmatprep.mubr.f32.mxu0 0.0
      %1372 = vmatmul.mubr.f32.gmra.mrb[0].mxu0 %v1173
      %v1373 = vpop.f32.mrb[0].mxu0
      %v1374 = vadd.f32 0.0, %v1373
      %v1375 = vpop.f32.mrb[0].mxu0
      %1376 = vmatprep.mubr.f32.mxu0 0.0
      %1377 = vmatmul.mubr.f32.gmra.mrb[0].mxu0 %v1176
      %v1378 = vpop.f32.mrb[0].mxu0
      %v1379 = vadd.f32 0.0, %v1378
      %v1380 = vpop.f32.mrb[0].mxu0
      %1381 = vmatprep.mubr.f32.mxu0 0.0
      %1382 = vmatmul.mubr.f32.gmra.mrb[0].mxu0 %v1179
      %v1383 = vpop.f32.mrb[0].mxu0
      %v1384 = vadd.f32 0.0, %v1383
      %v1385 = vpop.f32.mrb[0].mxu0
      %1386 = vmatprep.mubr.f32.mxu0 0.0
      %1387 = vmatmul.mubr.f32.gmra.mrb[0].mxu0 %v1182
      %v1388 = vpop.f32.mrb[0].mxu0
      %v1389 = vadd.f32 0.0, %v1388
      %v1390 = vpop.f32.mrb[0].mxu0
      %1391 = vmatprep.mubr.f32.mxu0 0.0
      %1392 = vmatmul.mubr.f32.gmra.mrb[0].mxu0 %v1185
      %v1393 = vpop.f32.mrb[0].mxu0
      %v1394 = vadd.f32 0.0, %v1393
      %v1395 = vpop.f32.mrb[0].mxu0
      %1396 = vdwg.mxu0
      %v1397 = vmul.f32 %v1359, %v875
      %v1398 = vmul.f32 %v1364, %v876
      %v1399 = vmul.f32 %v1369, %v877
      %v1400 = vmul.f32 %v1374, %v878
      %v1401 = vmul.f32 %v1379, %v879
      %v1402 = vmul.f32 %v1384, %v880
      %v1403 = vmul.f32 %v1389, %v881
      %v1404 = vmul.f32 %v1394, %v882
      %v1405 = vmul.f32 %v1254, %v1397
      %v1406 = vmul.f32 %v1259, %v1398
      %v1407 = vmul.f32 %v1264, %v1399
      %v1408 = vmul.f32 %v1269, %v1400
      %v1409 = vmul.f32 %v1274, %v1401
      %v1410 = vmul.f32 %v1279, %v1402
      %v1411 = vmul.f32 %v1284, %v1403
      %v1412 = vmul.f32 %v1289, %v1404
      %v1413 = vsub.f32 %v883, %v1405
      %v1414 = vsub.f32 %v884, %v1406
      %v1415 = vsub.f32 %v885, %v1407
      %v1416 = vsub.f32 %v886, %v1408
      %v1417 = vsub.f32 %v887, %v1409
      %v1418 = vsub.f32 %v888, %v1410
      %v1419 = vsub.f32 %v889, %v1411
      %v1420 = vsub.f32 %v890, %v1412
      %1422 = vset.pattern.permute.xlu0 0
      %1423 = vperm.xlu0 %1422, %v1397
      %v1424 = vpop.permute.xlu0 %1423
      %1427 = vset.pattern.permute.xlu0 0
      %1428 = vperm.xlu0 %1427, %v1398
      %v1429 = vpop.permute.xlu0 %1428
      %1432 = vset.pattern.permute.xlu0 0
      %1433 = vperm.xlu0 %1432, %v1399
      %v1434 = vpop.permute.xlu0 %1433
      %1437 = vset.pattern.permute.xlu0 0
      %1438 = vperm.xlu0 %1437, %v1400
      %v1439 = vpop.permute.xlu0 %1438
      %1442 = vset.pattern.permute.xlu0 0
      %1443 = vperm.xlu0 %1442, %v1401
      %v1444 = vpop.permute.xlu0 %1443
      %1447 = vset.pattern.permute.xlu0 0
      %1448 = vperm.xlu0 %1447, %v1402
      %v1449 = vpop.permute.xlu0 %1448
      %1452 = vset.pattern.permute.xlu0 0
      %1453 = vperm.xlu0 %1452, %v1403
      %v1454 = vpop.permute.xlu0 %1453
      %1457 = vset.pattern.permute.xlu0 0
      %1458 = vperm.xlu0 %1457, %v1404
      %v1459 = vpop.permute.xlu0 %1458
      %v1461 = vmul.f32 %v747, %v1424
      %v1462 = vmul.f32 %v748, %v1424
      %v1463 = vmul.f32 %v749, %v1429
      %v1464 = vmul.f32 %v750, %v1429
      %v1465 = vmul.f32 %v751, %v1434
      %v1466 = vmul.f32 %v752, %v1434
      %v1467 = vmul.f32 %v753, %v1439
      %v1468 = vmul.f32 %v754, %v1439
      %v1469 = vmul.f32 %v755, %v1444
      %v1470 = vmul.f32 %v756, %v1444
      %v1471 = vmul.f32 %v757, %v1449
      %v1472 = vmul.f32 %v758, %v1449
      %v1473 = vmul.f32 %v759, %v1454
      %v1474 = vmul.f32 %v760, %v1454
      %v1475 = vmul.f32 %v761, %v1459
      %v1476 = vmul.f32 %v762, %v1459
      %1478 = vset.pattern.permute.xlu0 0
      %1479 = vperm.xlu0 %1478, %v1413
      %v1480 = vpop.permute.xlu0 %1479
      %1483 = vset.pattern.permute.xlu0 0
      %1484 = vperm.xlu0 %1483, %v1414
      %v1485 = vpop.permute.xlu0 %1484
      %1488 = vset.pattern.permute.xlu0 0
      %1489 = vperm.xlu0 %1488, %v1415
      %v1490 = vpop.permute.xlu0 %1489
      %1493 = vset.pattern.permute.xlu0 0
      %1494 = vperm.xlu0 %1493, %v1416
      %v1495 = vpop.permute.xlu0 %1494
      %1498 = vset.pattern.permute.xlu0 0
      %1499 = vperm.xlu0 %1498, %v1417
      %v1500 = vpop.permute.xlu0 %1499
      %1503 = vset.pattern.permute.xlu0 0
      %1504 = vperm.xlu0 %1503, %v1418
      %v1505 = vpop.permute.xlu0 %1504
      %1508 = vset.pattern.permute.xlu0 0
      %1509 = vperm.xlu0 %1508, %v1419
      %v1510 = vpop.permute.xlu0 %1509
      %1513 = vset.pattern.permute.xlu0 0
      %1514 = vperm.xlu0 %1513, %v1420
      %v1515 = vpop.permute.xlu0 %1514
      %v1517 = vadd.f32 %v1461, %v1480
      %v1518 = vadd.f32 %v1462, %v1480
      %v1519 = vadd.f32 %v1463, %v1485
      %v1520 = vadd.f32 %v1464, %v1485
      %v1521 = vadd.f32 %v1465, %v1490
      %v1522 = vadd.f32 %v1466, %v1490
      %v1523 = vadd.f32 %v1467, %v1495
      %v1524 = vadd.f32 %v1468, %v1495
      %v1525 = vadd.f32 %v1469, %v1500
      %v1526 = vadd.f32 %v1470, %v1500
      %v1527 = vadd.f32 %v1471, %v1505
      %v1528 = vadd.f32 %v1472, %v1505
      %v1529 = vadd.f32 %v1473, %v1510
      %v1530 = vadd.f32 %v1474, %v1510
      %v1531 = vadd.f32 %v1475, %v1515
      %v1532 = vadd.f32 %v1476, %v1515
      %v1533 = vmax.f32 %v1517, 0.0
      %v1534 = vmax.f32 %v1518, 0.0
      %v1535 = vmax.f32 %v1519, 0.0
      %v1536 = vmax.f32 %v1520, 0.0
      %v1537 = vmax.f32 %v1521, 0.0
      %v1538 = vmax.f32 %v1522, 0.0
      %v1539 = vmax.f32 %v1523, 0.0
      %v1540 = vmax.f32 %v1524, 0.0
      %v1541 = vmax.f32 %v1525, 0.0
      %v1542 = vmax.f32 %v1526, 0.0
      %v1543 = vmax.f32 %v1527, 0.0
      %v1544 = vmax.f32 %v1528, 0.0
      %v1545 = vmax.f32 %v1529, 0.0
      %v1546 = vmax.f32 %v1530, 0.0
      %v1547 = vmax.f32 %v1531, 0.0
      %v1548 = vmax.f32 %v1532, 0.0
      %v1549 = vadd.f32 %v847, %v848
      %1550 = vadd.xlane.f32.xlu0 %v1549
      %v1551 = vpop.xlane.xlu0 %1550
      %v1552 = vadd.f32 %v849, %v850
      %1553 = vadd.xlane.f32.xlu0 %v1552
      %v1554 = vpop.xlane.xlu0 %1553
      %v1555 = vadd.f32 %v851, %v852
      %1556 = vadd.xlane.f32.xlu0 %v1555
      %v1557 = vpop.xlane.xlu0 %1556
      %v1558 = vadd.f32 %v853, %v854
      %1559 = vadd.xlane.f32.xlu0 %v1558
      %v1560 = vpop.xlane.xlu0 %1559
      %v1561 = vadd.f32 %v855, %v856
      %1562 = vadd.xlane.f32.xlu0 %v1561
      %v1563 = vpop.xlane.xlu0 %1562
      %v1564 = vadd.f32 %v857, %v858
      %1565 = vadd.xlane.f32.xlu0 %v1564
      %v1566 = vpop.xlane.xlu0 %1565
      %v1567 = vadd.f32 %v859, %v860
      %1568 = vadd.xlane.f32.xlu0 %v1567
      %v1569 = vpop.xlane.xlu0 %1568
      %v1570 = vadd.f32 %v861, %v862
      %1571 = vadd.xlane.f32.xlu0 %v1570
      %v1572 = vpop.xlane.xlu0 %1571
      %v1573 = vmul.f32 %v847, %v847
      %v1574 = vmul.f32 %v848, %v848
      %v1575 = vmul.f32 %v849, %v849
      %v1576 = vmul.f32 %v850, %v850
      %v1577 = vmul.f32 %v851, %v851
      %v1578 = vmul.f32 %v852, %v852
      %v1579 = vmul.f32 %v853, %v853
      %v1580 = vmul.f32 %v854, %v854
      %v1581 = vmul.f32 %v855, %v855
      %v1582 = vmul.f32 %v856, %v856
      %v1583 = vmul.f32 %v857, %v857
      %v1584 = vmul.f32 %v858, %v858
      %v1585 = vmul.f32 %v859, %v859
      %v1586 = vmul.f32 %v860, %v860
      %v1587 = vmul.f32 %v861, %v861
      %v1588 = vmul.f32 %v862, %v862
      %v1589 = vadd.f32 %v1573, %v1574
      %1590 = vadd.xlane.f32.xlu0 %v1589
      %v1591 = vpop.xlane.xlu0 %1590
      %v1592 = vadd.f32 %v1575, %v1576
      %1593 = vadd.xlane.f32.xlu0 %v1592
      %v1594 = vpop.xlane.xlu0 %1593
      %v1595 = vadd.f32 %v1577, %v1578
      %1596 = vadd.xlane.f32.xlu0 %v1595
      %v1597 = vpop.xlane.xlu0 %1596
      %v1598 = vadd.f32 %v1579, %v1580
      %1599 = vadd.xlane.f32.xlu0 %v1598
      %v1600 = vpop.xlane.xlu0 %1599
      %v1601 = vadd.f32 %v1581, %v1582
      %1602 = vadd.xlane.f32.xlu0 %v1601
      %v1603 = vpop.xlane.xlu0 %1602
      %v1604 = vadd.f32 %v1583, %v1584
      %1605 = vadd.xlane.f32.xlu0 %v1604
      %v1606 = vpop.xlane.xlu0 %1605
      %v1607 = vadd.f32 %v1585, %v1586
      %1608 = vadd.xlane.f32.xlu0 %v1607
      %v1609 = vpop.xlane.xlu0 %1608
      %v1610 = vadd.f32 %v1587, %v1588
      %1611 = vadd.xlane.f32.xlu0 %v1610
      %v1612 = vpop.xlane.xlu0 %1611
      %1613 = vmatprep.subr.mxu0 0.0
      %1614 = vmatpush1.msra.mxu0 %v1551
      %1615 = vmatprep.subr.mxu0 0.0
      %1616 = vmatpush1.msra.mxu0 %v1554
      %1617 = vmatprep.subr.mxu0 0.0
      %1618 = vmatpush1.msra.mxu0 %v1557
      %1619 = vmatprep.subr.mxu0 0.0
      %1620 = vmatpush1.msra.mxu0 %v1560
      %1621 = vmatprep.subr.mxu0 0.0
      %1622 = vmatpush1.msra.mxu0 %v1563
      %1623 = vmatprep.subr.mxu0 0.0
      %1624 = vmatpush1.msra.mxu0 %v1566
      %1625 = vmatprep.subr.mxu0 0.0
      %1626 = vmatpush1.msra.mxu0 %v1569
      %1627 = vmatprep.subr.mxu0 0.0
      %1628 = vmatpush1.msra.mxu0 %v1572
      %1629 = vmatprep.subr.mxu0 0.0
      %1630 = vmatpush1.msra.mxu0 0.0
      %1631 = vmatprep.subr.mxu0 0.0
      %1632 = vmatpush1.msra.mxu0 0.0
      %1633 = vmatprep.subr.mxu0 0.0
      %1634 = vmatpush1.msra.mxu0 0.0
      %1635 = vmatprep.subr.mxu0 0.0
      %1636 = vmatpush1.msra.mxu0 0.0
      %1637 = vmatprep.subr.mxu0 0.0
      %1638 = vmatpush1.msra.mxu0 0.0
      %1639 = vmatprep.subr.mxu0 0.0
      %1640 = vmatpush1.msra.mxu0 0.0
      %1641 = vmatprep.subr.mxu0 0.0
      %1642 = vmatpush1.msra.mxu0 0.0
      %1643 = vmatprep.subr.mxu0 0.0
      %1644 = vmatpush1.msra.mxu0 0.0
      %1645 = vmatprep.subr.mxu0 0.0
      %1646 = vmatpush1.msra.mxu0 0.0
      %1647 = vmatprep.subr.mxu0 0.0
      %1648 = vmatpush1.msra.mxu0 0.0
      %1649 = vmatprep.subr.mxu0 0.0
      %1650 = vmatpush1.msra.mxu0 0.0
      %1651 = vmatprep.subr.mxu0 0.0
      %1652 = vmatpush1.msra.mxu0 0.0
      %1653 = vmatprep.subr.mxu0 0.0
      %1654 = vmatpush1.msra.mxu0 0.0
      %1655 = vmatprep.subr.mxu0 0.0
      %1656 = vmatpush1.msra.mxu0 0.0
      %1657 = vmatprep.subr.mxu0 0.0
      %1658 = vmatpush1.msra.mxu0 0.0
      %1659 = vmatprep.subr.mxu0 0.0
      %1660 = vmatpush1.msra.mxu0 0.0
      %1661 = vmatprep.subr.mxu0 0.0
      %1662 = vmatpush1.msra.mxu0 0.0
      %1663 = vmatprep.subr.mxu0 0.0
      %1664 = vmatpush1.msra.mxu0 0.0
      %1665 = vmatprep.subr.mxu0 0.0
      %1666 = vmatpush1.msra.mxu0 0.0
      %1667 = vmatprep.subr.mxu0 0.0
      %1668 = vmatpush1.msra.mxu0 0.0
      %1669 = vmatprep.subr.mxu0 0.0
      %1670 = vmatpush1.msra.mxu0 0.0
      %1671 = vmatprep.subr.mxu0 0.0
      %1672 = vmatpush1.msra.mxu0 0.0
      %1673 = vmatprep.subr.mxu0 0.0
      %1674 = vmatpush1.msra.mxu0 0.0
      %1675 = vmatprep.subr.mxu0 0.0
      %1676 = vmatpush1.msra.mxu0 0.0
      %1677 = vmatprep.mubr.f32.mxu0 0.0
      %1678 = vmatmul.mubr.f32.gmra.mrb[0].mxu0 %v957
      %v1679 = vpop.f32.mrb[0].mxu0
      %v1680 = vadd.f32 0.0, %v1679
      %v1681 = vpop.f32.mrb[0].mxu0
      %1682 = vmatprep.mubr.f32.mxu0 0.0
      %1683 = vmatmul.mubr.f32.gmra.mrb[0].mxu0 %v960
      %v1684 = vpop.f32.mrb[0].mxu0
      %v1685 = vadd.f32 0.0, %v1684
      %v1686 = vpop.f32.mrb[0].mxu0
      %1687 = vmatprep.mubr.f32.mxu0 0.0
      %1688 = vmatmul.mubr.f32.gmra.mrb[0].mxu0 %v963
      %v1689 = vpop.f32.mrb[0].mxu0
      %v1690 = vadd.f32 0.0, %v1689
      %v1691 = vpop.f32.mrb[0].mxu0
      %1692 = vmatprep.mubr.f32.mxu0 0.0
      %1693 = vmatmul.mubr.f32.gmra.mrb[0].mxu0 %v966
      %v1694 = vpop.f32.mrb[0].mxu0
      %v1695 = vadd.f32 0.0, %v1694
      %v1696 = vpop.f32.mrb[0].mxu0
      %1697 = vdwg.mxu0
      %v1698 = vmul.f32 %v1680, 0.001953125
      %v1699 = vmul.f32 %v1685, 0.001953125
      %v1700 = vmul.f32 %v1690, 0.001953125
      %v1701 = vmul.f32 %v1695, 0.001953125
      %1702 = vmatprep.subr.mxu0 0.0
      %1703 = vmatpush1.msra.mxu0 %v1591
      %1704 = vmatprep.subr.mxu0 0.0
      %1705 = vmatpush1.msra.mxu0 %v1594
      %1706 = vmatprep.subr.mxu0 0.0
      %1707 = vmatpush1.msra.mxu0 %v1597
      %1708 = vmatprep.subr.mxu0 0.0
      %1709 = vmatpush1.msra.mxu0 %v1600
      %1710 = vmatprep.subr.mxu0 0.0
      %1711 = vmatpush1.msra.mxu0 %v1603
      %1712 = vmatprep.subr.mxu0 0.0
      %1713 = vmatpush1.msra.mxu0 %v1606
      %1714 = vmatprep.subr.mxu0 0.0
      %1715 = vmatpush1.msra.mxu0 %v1609
      %1716 = vmatprep.subr.mxu0 0.0
      %1717 = vmatpush1.msra.mxu0 %v1612
      %1718 = vmatprep.subr.mxu0 0.0
      %1719 = vmatpush1.msra.mxu0 0.0
      %1720 = vmatprep.subr.mxu0 0.0
      %1721 = vmatpush1.msra.mxu0 0.0
      %1722 = vmatprep.subr.mxu0 0.0
      %1723 = vmatpush1.msra.mxu0 0.0
      %1724 = vmatprep.subr.mxu0 0.0
      %1725 = vmatpush1.msra.mxu0 0.0
      %1726 = vmatprep.subr.mxu0 0.0
      %1727 = vmatpush1.msra.mxu0 0.0
      %1728 = vmatprep.subr.mxu0 0.0
      %1729 = vmatpush1.msra.mxu0 0.0
      %1730 = vmatprep.subr.mxu0 0.0
      %1731 = vmatpush1.msra.mxu0 0.0
      %1732 = vmatprep.subr.mxu0 0.0
      %1733 = vmatpush1.msra.mxu0 0.0
      %1734 = vmatprep.subr.mxu0 0.0
      %1735 = vmatpush1.msra.mxu0 0.0
      %1736 = vmatprep.subr.mxu0 0.0
      %1737 = vmatpush1.msra.mxu0 0.0
      %1738 = vmatprep.subr.mxu0 0.0
      %1739 = vmatpush1.msra.mxu0 0.0
      %1740 = vmatprep.subr.mxu0 0.0
      %1741 = vmatpush1.msra.mxu0 0.0
      %1742 = vmatprep.subr.mxu0 0.0
      %1743 = vmatpush1.msra.mxu0 0.0
      %1744 = vmatprep.subr.mxu0 0.0
      %1745 = vmatpush1.msra.mxu0 0.0
      %1746 = vmatprep.subr.mxu0 0.0
      %1747 = vmatpush1.msra.mxu0 0.0
      %1748 = vmatprep.subr.mxu0 0.0
      %1749 = vmatpush1.msra.mxu0 0.0
      %1750 = vmatprep.subr.mxu0 0.0
      %1751 = vmatpush1.msra.mxu0 0.0
      %1752 = vmatprep.subr.mxu0 0.0
      %1753 = vmatpush1.msra.mxu0 0.0
      %1754 = vmatprep.subr.mxu0 0.0
      %1755 = vmatpush1.msra.mxu0 0.0
      %1756 = vmatprep.subr.mxu0 0.0
      %1757 = vmatpush1.msra.mxu0 0.0
      %1758 = vmatprep.subr.mxu0 0.0
      %1759 = vmatpush1.msra.mxu0 0.0
      %1760 = vmatprep.subr.mxu0 0.0
      %1761 = vmatpush1.msra.mxu0 0.0
      %1762 = vmatprep.subr.mxu0 0.0
      %1763 = vmatpush1.msra.mxu0 0.0
      %1764 = vmatprep.subr.mxu0 0.0
      %1765 = vmatpush1.msra.mxu0 0.0
      %1766 = vmatprep.mubr.f32.mxu0 0.0
      %1767 = vmatmul.mubr.f32.gmra.mrb[0].mxu0 %v957
      %v1768 = vpop.f32.mrb[0].mxu0
      %v1769 = vadd.f32 0.0, %v1768
      %v1770 = vpop.f32.mrb[0].mxu0
      %1771 = vmatprep.mubr.f32.mxu0 0.0
      %1772 = vmatmul.mubr.f32.gmra.mrb[0].mxu0 %v960
      %v1773 = vpop.f32.mrb[0].mxu0
      %v1774 = vadd.f32 0.0, %v1773
      %v1775 = vpop.f32.mrb[0].mxu0
      %1776 = vmatprep.mubr.f32.mxu0 0.0
      %1777 = vmatmul.mubr.f32.gmra.mrb[0].mxu0 %v963
      %v1778 = vpop.f32.mrb[0].mxu0
      %v1779 = vadd.f32 0.0, %v1778
      %v1780 = vpop.f32.mrb[0].mxu0
      %1781 = vmatprep.mubr.f32.mxu0 0.0
      %1782 = vmatmul.mubr.f32.gmra.mrb[0].mxu0 %v966
      %v1783 = vpop.f32.mrb[0].mxu0
      %v1784 = vadd.f32 0.0, %v1783
      %v1785 = vpop.f32.mrb[0].mxu0
      %1786 = vdwg.mxu0
      %v1787 = vmul.f32 %v1769, 0.001953125
      %v1788 = vmul.f32 %v1774, 0.001953125
      %v1789 = vmul.f32 %v1779, 0.001953125
      %v1790 = vmul.f32 %v1784, 0.001953125
      %v1791 = vmul.f32 %v1698, %v1698
      %v1792 = vmul.f32 %v1699, %v1699
      %v1793 = vmul.f32 %v1700, %v1700
      %v1794 = vmul.f32 %v1701, %v1701
      %v1795 = vsub.f32 %v1787, %v1791
      %v1796 = vsub.f32 %v1788, %v1792
      %v1797 = vsub.f32 %v1789, %v1793
      %v1798 = vsub.f32 %v1790, %v1794
      %v1799 = vadd.f32 %v1795, 1e-05
      %v1800 = vadd.f32 %v1796, 1e-05
      %v1801 = vadd.f32 %v1797, 1e-05
      %v1802 = vadd.f32 %v1798, 1e-05
      %v1803 = vrsqrt.pop %v1799
      %v1804 = vrsqrt.pop %v1800
      %v1805 = vrsqrt.pop %v1801
      %v1806 = vrsqrt.pop %v1802
      %1807 = vmatprep.subr.mxu0 0.0
      %1808 = vmatpush1.msra.mxu0 %v1698
      %1809 = vmatprep.subr.mxu0 0.0
      %1810 = vmatpush1.msra.mxu0 %v1699
      %1811 = vmatprep.subr.mxu0 0.0
      %1812 = vmatpush1.msra.mxu0 %v1700
      %1813 = vmatprep.subr.mxu0 0.0
      %1814 = vmatpush1.msra.mxu0 %v1701
      %1815 = vmatprep.subr.mxu0 0.0
      %1816 = vmatpush1.msra.mxu0 0.0
      %1817 = vmatprep.subr.mxu0 0.0
      %1818 = vmatpush1.msra.mxu0 0.0
      %1819 = vmatprep.subr.mxu0 0.0
      %1820 = vmatpush1.msra.mxu0 0.0
      %1821 = vmatprep.subr.mxu0 0.0
      %1822 = vmatpush1.msra.mxu0 0.0
      %1823 = vmatprep.subr.mxu0 0.0
      %1824 = vmatpush1.msra.mxu0 0.0
      %1825 = vmatprep.subr.mxu0 0.0
      %1826 = vmatpush1.msra.mxu0 0.0
      %1827 = vmatprep.subr.mxu0 0.0
      %1828 = vmatpush1.msra.mxu0 0.0
      %1829 = vmatprep.subr.mxu0 0.0
      %1830 = vmatpush1.msra.mxu0 0.0
      %1831 = vmatprep.subr.mxu0 0.0
      %1832 = vmatpush1.msra.mxu0 0.0
      %1833 = vmatprep.subr.mxu0 0.0
      %1834 = vmatpush1.msra.mxu0 0.0
      %1835 = vmatprep.subr.mxu0 0.0
      %1836 = vmatpush1.msra.mxu0 0.0
      %1837 = vmatprep.subr.mxu0 0.0
      %1838 = vmatpush1.msra.mxu0 0.0
      %1839 = vmatprep.subr.mxu0 0.0
      %1840 = vmatpush1.msra.mxu0 0.0
      %1841 = vmatprep.subr.mxu0 0.0
      %1842 = vmatpush1.msra.mxu0 0.0
      %1843 = vmatprep.subr.mxu0 0.0
      %1844 = vmatpush1.msra.mxu0 0.0
      %1845 = vmatprep.subr.mxu0 0.0
      %1846 = vmatpush1.msra.mxu0 0.0
      %1847 = vmatprep.subr.mxu0 0.0
      %1848 = vmatpush1.msra.mxu0 0.0
      %1849 = vmatprep.subr.mxu0 0.0
      %1850 = vmatpush1.msra.mxu0 0.0
      %1851 = vmatprep.subr.mxu0 0.0
      %1852 = vmatpush1.msra.mxu0 0.0
      %1853 = vmatprep.subr.mxu0 0.0
      %1854 = vmatpush1.msra.mxu0 0.0
      %1855 = vmatprep.subr.mxu0 0.0
      %1856 = vmatpush1.msra.mxu0 0.0
      %1857 = vmatprep.subr.mxu0 0.0
      %1858 = vmatpush1.msra.mxu0 0.0
      %1859 = vmatprep.subr.mxu0 0.0
      %1860 = vmatpush1.msra.mxu0 0.0
      %1861 = vmatprep.subr.mxu0 0.0
      %1862 = vmatpush1.msra.mxu0 0.0
      %1863 = vmatprep.subr.mxu0 0.0
      %1864 = vmatpush1.msra.mxu0 0.0
      %1865 = vmatprep.subr.mxu0 0.0
      %1866 = vmatpush1.msra.mxu0 0.0
      %1867 = vmatprep.subr.mxu0 0.0
      %1868 = vmatpush1.msra.mxu0 0.0
      %1869 = vmatprep.subr.mxu0 0.0
      %1870 = vmatpush1.msra.mxu0 0.0
      %1871 = vmatprep.mubr.f32.mxu0 0.0
      %1872 = vmatmul.mubr.f32.gmra.mrb[0].mxu0 %v1164
      %v1873 = vpop.f32.mrb[0].mxu0
      %v1874 = vadd.f32 0.0, %v1873
      %v1875 = vpop.f32.mrb[0].mxu0
      %1876 = vmatprep.mubr.f32.mxu0 0.0
      %1877 = vmatmul.mubr.f32.gmra.mrb[0].mxu0 %v1167
      %v1878 = vpop.f32.mrb[0].mxu0
      %v1879 = vadd.f32 0.0, %v1878
      %v1880 = vpop.f32.mrb[0].mxu0
      %1881 = vmatprep.mubr.f32.mxu0 0.0
      %1882 = vmatmul.mubr.f32.gmra.mrb[0].mxu0 %v1170
      %v1883 = vpop.f32.mrb[0].mxu0
      %v1884 = vadd.f32 0.0, %v1883
      %v1885 = vpop.f32.mrb[0].mxu0
      %1886 = vmatprep.mubr.f32.mxu0 0.0
      %1887 = vmatmul.mubr.f32.gmra.mrb[0].mxu0 %v1173
      %v1888 = vpop.f32.mrb[0].mxu0
      %v1889 = vadd.f32 0.0, %v1888
      %v1890 = vpop.f32.mrb[0].mxu0
      %1891 = vmatprep.mubr.f32.mxu0 0.0
      %1892 = vmatmul.mubr.f32.gmra.mrb[0].mxu0 %v1176
      %v1893 = vpop.f32.mrb[0].mxu0
      %v1894 = vadd.f32 0.0, %v1893
      %v1895 = vpop.f32.mrb[0].mxu0
      %1896 = vmatprep.mubr.f32.mxu0 0.0
      %1897 = vmatmul.mubr.f32.gmra.mrb[0].mxu0 %v1179
      %v1898 = vpop.f32.mrb[0].mxu0
      %v1899 = vadd.f32 0.0, %v1898
      %v1900 = vpop.f32.mrb[0].mxu0
      %1901 = vmatprep.mubr.f32.mxu0 0.0
      %1902 = vmatmul.mubr.f32.gmra.mrb[0].mxu0 %v1182
      %v1903 = vpop.f32.mrb[0].mxu0
      %v1904 = vadd.f32 0.0, %v1903
      %v1905 = vpop.f32.mrb[0].mxu0
      %1906 = vmatprep.mubr.f32.mxu0 0.0
      %1907 = vmatmul.mubr.f32.gmra.mrb[0].mxu0 %v1185
      %v1908 = vpop.f32.mrb[0].mxu0
      %v1909 = vadd.f32 0.0, %v1908
      %v1910 = vpop.f32.mrb[0].mxu0
      %1911 = vdwg.mxu0
      %1912 = vmatprep.subr.mxu0 0.0
      %1913 = vmatpush1.msra.mxu0 %v1803
      %1914 = vmatprep.subr.mxu0 0.0
      %1915 = vmatpush1.msra.mxu0 %v1804
      %1916 = vmatprep.subr.mxu0 0.0
      %1917 = vmatpush1.msra.mxu0 %v1805
      %1918 = vmatprep.subr.mxu0 0.0
      %1919 = vmatpush1.msra.mxu0 %v1806
      %1920 = vmatprep.subr.mxu0 0.0
      %1921 = vmatpush1.msra.mxu0 0.0
      %1922 = vmatprep.subr.mxu0 0.0
      %1923 = vmatpush1.msra.mxu0 0.0
      %1924 = vmatprep.subr.mxu0 0.0
      %1925 = vmatpush1.msra.mxu0 0.0
      %1926 = vmatprep.subr.mxu0 0.0
      %1927 = vmatpush1.msra.mxu0 0.0
      %1928 = vmatprep.subr.mxu0 0.0
      %1929 = vmatpush1.msra.mxu0 0.0
      %1930 = vmatprep.subr.mxu0 0.0
      %1931 = vmatpush1.msra.mxu0 0.0
      %1932 = vmatprep.subr.mxu0 0.0
      %1933 = vmatpush1.msra.mxu0 0.0
      %1934 = vmatprep.subr.mxu0 0.0
      %1935 = vmatpush1.msra.mxu0 0.0
      %1936 = vmatprep.subr.mxu0 0.0
      %1937 = vmatpush1.msra.mxu0 0.0
      %1938 = vmatprep.subr.mxu0 0.0
      %1939 = vmatpush1.msra.mxu0 0.0
      %1940 = vmatprep.subr.mxu0 0.0
      %1941 = vmatpush1.msra.mxu0 0.0
      %1942 = vmatprep.subr.mxu0 0.0
      %1943 = vmatpush1.msra.mxu0 0.0
      %1944 = vmatprep.subr.mxu0 0.0
      %1945 = vmatpush1.msra.mxu0 0.0
      %1946 = vmatprep.subr.mxu0 0.0
      %1947 = vmatpush1.msra.mxu0 0.0
      %1948 = vmatprep.subr.mxu0 0.0
      %1949 = vmatpush1.msra.mxu0 0.0
      %1950 = vmatprep.subr.mxu0 0.0
      %1951 = vmatpush1.msra.mxu0 0.0
      %1952 = vmatprep.subr.mxu0 0.0
      %1953 = vmatpush1.msra.mxu0 0.0
      %1954 = vmatprep.subr.mxu0 0.0
      %1955 = vmatpush1.msra.mxu0 0.0
      %1956 = vmatprep.subr.mxu0 0.0
      %1957 = vmatpush1.msra.mxu0 0.0
      %1958 = vmatprep.subr.mxu0 0.0
      %1959 = vmatpush1.msra.mxu0 0.0
      %1960 = vmatprep.subr.mxu0 0.0
      %1961 = vmatpush1.msra.mxu0 0.0
      %1962 = vmatprep.subr.mxu0 0.0
      %1963 = vmatpush1.msra.mxu0 0.0
      %1964 = vmatprep.subr.mxu0 0.0
      %1965 = vmatpush1.msra.mxu0 0.0
      %1966 = vmatprep.subr.mxu0 0.0
      %1967 = vmatpush1.msra.mxu0 0.0
      %1968 = vmatprep.subr.mxu0 0.0
      %1969 = vmatpush1.msra.mxu0 0.0
      %1970 = vmatprep.subr.mxu0 0.0
      %1971 = vmatpush1.msra.mxu0 0.0
      %1972 = vmatprep.subr.mxu0 0.0
      %1973 = vmatpush1.msra.mxu0 0.0
      %1974 = vmatprep.subr.mxu0 0.0
      %1975 = vmatpush1.msra.mxu0 0.0
      %1976 = vmatprep.mubr.f32.mxu0 0.0
      %1977 = vmatmul.mubr.f32.gmra.mrb[0].mxu0 %v1164
      %v1978 = vpop.f32.mrb[0].mxu0
      %v1979 = vadd.f32 0.0, %v1978
      %v1980 = vpop.f32.mrb[0].mxu0
      %1981 = vmatprep.mubr.f32.mxu0 0.0
      %1982 = vmatmul.mubr.f32.gmra.mrb[0].mxu0 %v1167
      %v1983 = vpop.f32.mrb[0].mxu0
      %v1984 = vadd.f32 0.0, %v1983
      %v1985 = vpop.f32.mrb[0].mxu0
      %1986 = vmatprep.mubr.f32.mxu0 0.0
      %1987 = vmatmul.mubr.f32.gmra.mrb[0].mxu0 %v1170
      %v1988 = vpop.f32.mrb[0].mxu0
      %v1989 = vadd.f32 0.0, %v1988
      %v1990 = vpop.f32.mrb[0].mxu0
      %1991 = vmatprep.mubr.f32.mxu0 0.0
      %1992 = vmatmul.mubr.f32.gmra.mrb[0].mxu0 %v1173
      %v1993 = vpop.f32.mrb[0].mxu0
      %v1994 = vadd.f32 0.0, %v1993
      %v1995 = vpop.f32.mrb[0].mxu0
      %1996 = vmatprep.mubr.f32.mxu0 0.0
      %1997 = vmatmul.mubr.f32.gmra.mrb[0].mxu0 %v1176
      %v1998 = vpop.f32.mrb[0].mxu0
      %v1999 = vadd.f32 0.0, %v1998
      %v2000 = vpop.f32.mrb[0].mxu0
      %2001 = vmatprep.mubr.f32.mxu0 0.0
      %2002 = vmatmul.mubr.f32.gmra.mrb[0].mxu0 %v1179
      %v2003 = vpop.f32.mrb[0].mxu0
      %v2004 = vadd.f32 0.0, %v2003
      %v2005 = vpop.f32.mrb[0].mxu0
      %2006 = vmatprep.mubr.f32.mxu0 0.0
      %2007 = vmatmul.mubr.f32.gmra.mrb[0].mxu0 %v1182
      %v2008 = vpop.f32.mrb[0].mxu0
      %v2009 = vadd.f32 0.0, %v2008
      %v2010 = vpop.f32.mrb[0].mxu0
      %2011 = vmatprep.mubr.f32.mxu0 0.0
      %2012 = vmatmul.mubr.f32.gmra.mrb[0].mxu0 %v1185
      %v2013 = vpop.f32.mrb[0].mxu0
      %v2014 = vadd.f32 0.0, %v2013
      %v2015 = vpop.f32.mrb[0].mxu0
      %2016 = vdwg.mxu0
      %v2017 = vmul.f32 %v1979, %v875
      %v2018 = vmul.f32 %v1984, %v876
      %v2019 = vmul.f32 %v1989, %v877
      %v2020 = vmul.f32 %v1994, %v878
      %v2021 = vmul.f32 %v1999, %v879
      %v2022 = vmul.f32 %v2004, %v880
      %v2023 = vmul.f32 %v2009, %v881
      %v2024 = vmul.f32 %v2014, %v882
      %v2025 = vmul.f32 %v1874, %v2017
      %v2026 = vmul.f32 %v1879, %v2018
      %v2027 = vmul.f32 %v1884, %v2019
      %v2028 = vmul.f32 %v1889, %v2020
      %v2029 = vmul.f32 %v1894, %v2021
      %v2030 = vmul.f32 %v1899, %v2022
      %v2031 = vmul.f32 %v1904, %v2023
      %v2032 = vmul.f32 %v1909, %v2024
      %v2033 = vsub.f32 %v883, %v2025
      %v2034 = vsub.f32 %v884, %v2026
      %v2035 = vsub.f32 %v885, %v2027
      %v2036 = vsub.f32 %v886, %v2028
      %v2037 = vsub.f32 %v887, %v2029
      %v2038 = vsub.f32 %v888, %v2030
      %v2039 = vsub.f32 %v889, %v2031
      %v2040 = vsub.f32 %v890, %v2032
      %2042 = vset.pattern.permute.xlu0 0
      %2043 = vperm.xlu0 %2042, %v2017
      %v2044 = vpop.permute.xlu0 %2043
      %2047 = vset.pattern.permute.xlu0 0
      %2048 = vperm.xlu0 %2047, %v2018
      %v2049 = vpop.permute.xlu0 %2048
      %2052 = vset.pattern.permute.xlu0 0
      %2053 = vperm.xlu0 %2052, %v2019
      %v2054 = vpop.permute.xlu0 %2053
      %2057 = vset.pattern.permute.xlu0 0
      %2058 = vperm.xlu0 %2057, %v2020
      %v2059 = vpop.permute.xlu0 %2058
      %2062 = vset.pattern.permute.xlu0 0
      %2063 = vperm.xlu0 %2062, %v2021
      %v2064 = vpop.permute.xlu0 %2063
      %2067 = vset.pattern.permute.xlu0 0
      %2068 = vperm.xlu0 %2067, %v2022
      %v2069 = vpop.permute.xlu0 %2068
      %2072 = vset.pattern.permute.xlu0 0
      %2073 = vperm.xlu0 %2072, %v2023
      %v2074 = vpop.permute.xlu0 %2073
      %2077 = vset.pattern.permute.xlu0 0
      %2078 = vperm.xlu0 %2077, %v2024
      %v2079 = vpop.permute.xlu0 %2078
      %v2081 = vmul.f32 %v847, %v2044
      %v2082 = vmul.f32 %v848, %v2044
      %v2083 = vmul.f32 %v849, %v2049
      %v2084 = vmul.f32 %v850, %v2049
      %v2085 = vmul.f32 %v851, %v2054
      %v2086 = vmul.f32 %v852, %v2054
      %v2087 = vmul.f32 %v853, %v2059
      %v2088 = vmul.f32 %v854, %v2059
      %v2089 = vmul.f32 %v855, %v2064
      %v2090 = vmul.f32 %v856, %v2064
      %v2091 = vmul.f32 %v857, %v2069
      %v2092 = vmul.f32 %v858, %v2069
      %v2093 = vmul.f32 %v859, %v2074
      %v2094 = vmul.f32 %v860, %v2074
      %v2095 = vmul.f32 %v861, %v2079
      %v2096 = vmul.f32 %v862, %v2079
      %2098 = vset.pattern.permute.xlu0 0
      %2099 = vperm.xlu0 %2098, %v2033
      %v2100 = vpop.permute.xlu0 %2099
      %2103 = vset.pattern.permute.xlu0 0
      %2104 = vperm.xlu0 %2103, %v2034
      %v2105 = vpop.permute.xlu0 %2104
      %2108 = vset.pattern.permute.xlu0 0
      %2109 = vperm.xlu0 %2108, %v2035
      %v2110 = vpop.permute.xlu0 %2109
      %2113 = vset.pattern.permute.xlu0 0
      %2114 = vperm.xlu0 %2113, %v2036
      %v2115 = vpop.permute.xlu0 %2114
      %2118 = vset.pattern.permute.xlu0 0
      %2119 = vperm.xlu0 %2118, %v2037
      %v2120 = vpop.permute.xlu0 %2119
      %2123 = vset.pattern.permute.xlu0 0
      %2124 = vperm.xlu0 %2123, %v2038
      %v2125 = vpop.permute.xlu0 %2124
      %2128 = vset.pattern.permute.xlu0 0
      %2129 = vperm.xlu0 %2128, %v2039
      %v2130 = vpop.permute.xlu0 %2129
      %2133 = vset.pattern.permute.xlu0 0
      %2134 = vperm.xlu0 %2133, %v2040
      %v2135 = vpop.permute.xlu0 %2134
      %v2137 = vadd.f32 %v2081, %v2100
      %v2138 = vadd.f32 %v2082, %v2100
      %v2139 = vadd.f32 %v2083, %v2105
      %v2140 = vadd.f32 %v2084, %v2105
      %v2141 = vadd.f32 %v2085, %v2110
      %v2142 = vadd.f32 %v2086, %v2110
      %v2143 = vadd.f32 %v2087, %v2115
      %v2144 = vadd.f32 %v2088, %v2115
      %v2145 = vadd.f32 %v2089, %v2120
      %v2146 = vadd.f32 %v2090, %v2120
      %v2147 = vadd.f32 %v2091, %v2125
      %v2148 = vadd.f32 %v2092, %v2125
      %v2149 = vadd.f32 %v2093, %v2130
      %v2150 = vadd.f32 %v2094, %v2130
      %v2151 = vadd.f32 %v2095, %v2135
      %v2152 = vadd.f32 %v2096, %v2135
      %v2153 = vmax.f32 %v2137, 0.0
      %v2154 = vmax.f32 %v2138, 0.0
      %v2155 = vmax.f32 %v2139, 0.0
      %v2156 = vmax.f32 %v2140, 0.0
      %v2157 = vmax.f32 %v2141, 0.0
      %v2158 = vmax.f32 %v2142, 0.0
      %v2159 = vmax.f32 %v2143, 0.0
      %v2160 = vmax.f32 %v2144, 0.0
      %v2161 = vmax.f32 %v2145, 0.0
      %v2162 = vmax.f32 %v2146, 0.0
      %v2163 = vmax.f32 %v2147, 0.0
      %v2164 = vmax.f32 %v2148, 0.0
      %v2165 = vmax.f32 %v2149, 0.0
      %v2166 = vmax.f32 %v2150, 0.0
      %v2167 = vmax.f32 %v2151, 0.0
      %v2168 = vmax.f32 %v2152, 0.0
      %v2169 = vld [vmem:[%s9] sm:$0x1]
      %v2170 = vld [vmem:[#allocation2] sm:$0x1]
      %v2171 = vpack.c.bf16 %v1535, %v1533
      %v2172 = vpack.c.bf16 %v1536, %v1534
      %v2173 = vpack.c.bf16 %v1539, %v1537
      %v2174 = vpack.c.bf16 %v1540, %v1538
      %v2175 = vpack.c.bf16 %v1543, %v1541
      %v2176 = vpack.c.bf16 %v1544, %v1542
      %v2177 = vpack.c.bf16 %v1547, %v1545
      %v2178 = vpack.c.bf16 %v1548, %v1546
      %2180 = vset.pattern.permute.xlu0 0
      %2181 = vperm.xlu0 %2180, %v2170
      %v2182 = vpop.permute.xlu0 %2181
      %v2184 = vlaneseq
      %v2185 = vshrl.u32 %v2184, 7
      %v2186 = vsub.s32 0, %v2185
      %v2187 = vrot.slane %v2182, %v2186
      %v2189 = vsel %vm955, %v2169, 0
      %2191 = vmatprep.subr.bf16.mxu0 %v2172
      %2192 = vmatpush1.bf16.msra.mxu0 %v2171
      %2193 = vmatprep.subr.bf16.mxu0 %v2174
      %2194 = vmatpush1.bf16.msra.mxu0 %v2173
      %2195 = vmatprep.subr.bf16.mxu0 %v2176
      %2196 = vmatpush1.bf16.msra.mxu0 %v2175
      %2197 = vmatprep.subr.bf16.mxu0 %v2178
      %2198 = vmatpush1.bf16.msra.mxu0 %v2177
      %2199 = vmatprep.subr.bf16.mxu0 0
      %2200 = vmatpush1.bf16.msra.mxu0 0
      %2201 = vmatprep.subr.bf16.mxu0 0
      %2202 = vmatpush1.bf16.msra.mxu0 0
      %2203 = vmatprep.subr.bf16.mxu0 0
      %2204 = vmatpush1.bf16.msra.mxu0 0
      %2205 = vmatprep.subr.bf16.mxu0 0
      %2206 = vmatpush1.bf16.msra.mxu0 0
      %2207 = vmatprep.subr.bf16.mxu0 0
      %2208 = vmatpush1.bf16.msra.mxu0 0
      %2209 = vmatprep.subr.bf16.mxu0 0
      %2210 = vmatpush1.bf16.msra.mxu0 0
      %2211 = vmatprep.subr.bf16.mxu0 0
      %2212 = vmatpush1.bf16.msra.mxu0 0
      %2213 = vmatprep.subr.bf16.mxu0 0
      %2214 = vmatpush1.bf16.msra.mxu0 0
      %2215 = vmatprep.subr.bf16.mxu0 0
      %2216 = vmatpush1.bf16.msra.mxu0 0
      %2217 = vmatprep.subr.bf16.mxu0 0
      %2218 = vmatpush1.bf16.msra.mxu0 0
      %2219 = vmatprep.subr.bf16.mxu0 0
      %2220 = vmatpush1.bf16.msra.mxu0 0
      %2221 = vmatprep.subr.bf16.mxu0 0
      %2222 = vmatpush1.bf16.msra.mxu0 0
      %2223 = vmatprep.mubr.bf16.mxu0 0
      %2224 = vmatmul.mubr.bf16.gmra.mrb[0].mxu0 %v2189
      %v2225 = vpop.f32.mrb[0].mxu0
      %v2226 = vadd.f32 %v2187, %v2225
      %v2227 = vpop.f32.mrb[0].mxu0
      %v2228 = vadd.f32 %v2187, %v2227
      %v2229 = vpop.f32.mrb[0].mxu0
      %v2230 = vpop.f32.mrb[0].mxu0
      %2231 = vdwg.mxu0
      %v2232 = vpack.c.bf16 %v2155, %v2153
      %v2233 = vpack.c.bf16 %v2156, %v2154
      %v2234 = vpack.c.bf16 %v2159, %v2157
      %v2235 = vpack.c.bf16 %v2160, %v2158
      %v2236 = vpack.c.bf16 %v2163, %v2161
      %v2237 = vpack.c.bf16 %v2164, %v2162
      %v2238 = vpack.c.bf16 %v2167, %v2165
      %v2239 = vpack.c.bf16 %v2168, %v2166
      %2240 = vmatprep.subr.bf16.mxu0 %v2233
      %2241 = vmatpush1.bf16.msra.mxu0 %v2232
      %2242 = vmatprep.subr.bf16.mxu0 %v2235
      %2243 = vmatpush1.bf16.msra.mxu0 %v2234
      %2244 = vmatprep.subr.bf16.mxu0 %v2237
      %2245 = vmatpush1.bf16.msra.mxu0 %v2236
      %2246 = vmatprep.subr.bf16.mxu0 %v2239
      %2247 = vmatpush1.bf16.msra.mxu0 %v2238
      %2248 = vmatprep.subr.bf16.mxu0 0
      %2249 = vmatpush1.bf16.msra.mxu0 0
      %2250 = vmatprep.subr.bf16.mxu0 0
      %2251 = vmatpush1.bf16.msra.mxu0 0
      %2252 = vmatprep.subr.bf16.mxu0 0
      %2253 = vmatpush1.bf16.msra.mxu0 0
      %2254 = vmatprep.subr.bf16.mxu0 0
      %2255 = vmatpush1.bf16.msra.mxu0 0
      %2256 = vmatprep.subr.bf16.mxu0 0
      %2257 = vmatpush1.bf16.msra.mxu0 0
      %2258 = vmatprep.subr.bf16.mxu0 0
      %2259 = vmatpush1.bf16.msra.mxu0 0
      %2260 = vmatprep.subr.bf16.mxu0 0
      %2261 = vmatpush1.bf16.msra.mxu0 0
      %2262 = vmatprep.subr.bf16.mxu0 0
      %2263 = vmatpush1.bf16.msra.mxu0 0
      %2264 = vmatprep.subr.bf16.mxu0 0
      %2265 = vmatpush1.bf16.msra.mxu0 0
      %2266 = vmatprep.subr.bf16.mxu0 0
      %2267 = vmatpush1.bf16.msra.mxu0 0
      %2268 = vmatprep.subr.bf16.mxu0 0
      %2269 = vmatpush1.bf16.msra.mxu0 0
      %2270 = vmatprep.subr.bf16.mxu0 0
      %2271 = vmatpush1.bf16.msra.mxu0 0
      %2272 = vmatprep.mubr.bf16.mxu0 0
      %2273 = vmatmul.mubr.bf16.gmra.mrb[0].mxu0 %v2189
      %v2274 = vpop.f32.mrb[0].mxu0
      %v2275 = vadd.f32 %v2187, %v2274
      %v2276 = vpop.f32.mrb[0].mxu0
      %v2277 = vadd.f32 %v2187, %v2276
      %v2278 = vpop.f32.mrb[0].mxu0
      %v2279 = vpop.f32.mrb[0].mxu0
      %2280 = vdwg.mxu0
      %v2281 = vxor.u32 %v2226, 2147483648
      %v2282 = vxor.u32 %v2228, 2147483648
      %v2283 = vmul.f32 %v2281, 1.442695
      %v2284 = vpow.pop %v2283
      %v2285 = vmul.f32 %v2282, 1.442695
      %v2286 = vpow.pop %v2285
      %v2287 = vadd.f32 %v2284, 1.0
      %v2288 = vadd.f32 %v2286, 1.0
      %v2289 = vrcp.pop %v2287
      %v2290 = vmul.f32 1.0, %v2289
      %v2291 = vrcp.pop %v2288
      %v2292 = vmul.f32 1.0, %v2291
      %v2293 = vxor.u32 %v2275, 2147483648
      %v2294 = vxor.u32 %v2277, 2147483648
      %v2295 = vmul.f32 %v2293, 1.442695
      %v2296 = vpow.pop %v2295
      %v2297 = vmul.f32 %v2294, 1.442695
      %v2298 = vpow.pop %v2297
      %v2299 = vadd.f32 %v2296, 1.0
      %v2300 = vadd.f32 %v2298, 1.0
      %v2301 = vrcp.pop %v2299
      %v2302 = vmul.f32 1.0, %v2301
      %v2303 = vrcp.pop %v2300
      %v2304 = vmul.f32 1.0, %v2303
      %v2305 = vlaneseq
      %v2306 = vshrl.u32 %v2305, 7
      %v2307 = vsub.s32 0, %v2306
      %v2308 = vrot.slane %v2290, %v2307
      %v2309 = vlaneseq
      %v2310 = vshrl.u32 %v2309, 7
      %v2311 = vsub.s32 0, %v2310
      %v2312 = vrot.slane %v2292, %v2311
      %v2315 = vcombine.low %v2308, %v2312
      %v2317 = vmul.f32 %v446, %v2315
      %v2319 = vcombine.high %v2317, %v2317
      %vm2321 = vcmask 1043456
      %v2322 = vsel %vm2321, %v2317, 0.0
      %v2323 = vsel %vm2321, %v2319, 0.0
      %v2324 = vadd.f32 %v2322, %v2323
      %2325 = vadd.xlane.f32.xlu0 %v2324
      %v2326 = vpop.xlane.xlu0 %2325
      %vm2327 = vcmask 3072
      %2328 = vst.msk [vmem:[%s440] sm:$0xf] %vm2327, %v2326
      %v2329 = vlaneseq
      %v2330 = vshrl.u32 %v2329, 7
      %v2331 = vsub.s32 0, %v2330
      %v2332 = vrot.slane %v2302, %v2331
      %v2333 = vlaneseq
      %v2334 = vshrl.u32 %v2333, 7
      %v2335 = vsub.s32 0, %v2334
      %v2336 = vrot.slane %v2304, %v2335
      %v2339 = vcombine.low %v2332, %v2336
      %v2341 = vmul.f32 %v447, %v2339
      %v2343 = vcombine.high %v2341, %v2341
      %v2345 = vsel %vm2321, %v2341, 0.0
      %v2346 = vsel %vm2321, %v2343, 0.0
      %v2347 = vadd.f32 %v2345, %v2346
      %2348 = vadd.xlane.f32.xlu0 %v2347
      %v2349 = vpop.xlane.xlu0 %2348
      %2350 = vst.msk [vmem:[%s444] sm:$0xf] %vm2327, %v2349
      %p2351 = scmp.lt.s32.totalorder %s26, 3
      %s2352 = scalar_select %p2351, %s26, 3
      %s2353 = smul.addr %s2352, 4
      %s2354 = scalar_lea.vmem %s11, %s2353
      %p2355 = scmp.lt.s32.totalorder %s26, 3
      %s2356 = scalar_select %p2355, %s26, 3
      %s2357 = smul.addr %s2356, 4
      %s2358 = scalar_lea.vmem %s12, %s2357
      // Predicated region
      $region65: #{tpu_custom_call.1} parent=63 // pred_check
        %p2359 = pneg %p285
      $region66: #{tpu_custom_call.1} parent=63 // pred_check_branch
        %2361 = sbr.rel (%p2359) target = $region68
      $region67: #{tpu_custom_call.1} parent=63 // pred_region
        _
      $region68: #{tpu_custom_call.1} parent=63 // pred_fallthru
        _
      // Predicated region
      $region69: #{tpu_custom_call.1} parent=63 // pred_check
        %p2362 = pneg %p311
      $region70: #{tpu_custom_call.1} parent=63 // pred_check_branch
        %2364 = sbr.rel (%p2362) target = $region72
      $region71: #{tpu_custom_call.1} parent=63 // pred_region
        _
      $region72: #{tpu_custom_call.1} parent=63 // pred_fallthru
        _
    $region64: #{tpu_custom_call.1} parent=5 // pred_fallthru
      _
    %p2365 = scmp.le.s32.totalorder 2, %s21
    // Predicated region
    $region73: #{tpu_custom_call.1} parent=5 // pred_check
      %p2366 = pneg %p2365
    $region74: #{tpu_custom_call.1} parent=5 // pred_check_branch
      %2368 = sbr.rel (%p2366) target = $region76
    $region75: #{tpu_custom_call.1} parent=5 // pred_region
      %s2369 = ssub.s32 %s21, 2
      // Predicated region
      $region77: #{tpu_custom_call.1} parent=75 // pred_check
        %p2370 = pneg %p291
      $region78: #{tpu_custom_call.1} parent=75 // pred_check_branch
        %2372 = sbr.rel (%p2370) target = $region80
      $region79: #{tpu_custom_call.1} parent=75 // pred_region
        %p2373 = scmp.lt.s32.totalorder %s27, 3
        %s2374 = scalar_select %p2373, %s27, 3
        %s2375 = smul.addr %s2374, 4
        %s2376 = scalar_lea.vmem %s11, %s2375
      $region80: #{tpu_custom_call.1} parent=75 // pred_fallthru
        _
      // Predicated region
      $region81: #{tpu_custom_call.1} parent=75 // pred_check
        %p2377 = pneg %p317
      $region82: #{tpu_custom_call.1} parent=75 // pred_check_branch
        %2379 = sbr.rel (%p2377) target = $region84
      $region83: #{tpu_custom_call.1} parent=75 // pred_region
        %p2380 = scmp.lt.s32.totalorder %s27, 3
        %s2381 = scalar_select %p2380, %s27, 3
        %s2382 = smul.addr %s2381, 4
        %s2383 = scalar_lea.vmem %s12, %s2382
      $region84: #{tpu_custom_call.1} parent=75 // pred_fallthru
        _
    $region76: #{tpu_custom_call.1} parent=5 // pred_fallthru
      _
  $region6: #{tpu_custom_call.1} parent=0 // loop_footer
    %s25 = sadd.s32 1, %s21
  $region7: #{tpu_custom_call.1} parent=0 // loop_footer_branch
    %20 = sbr.rel target = $region3
  $region8: #{tpu_custom_call.1} parent=0 // loop_exit
    _

</llo_original>
